<compile_context>
chip_gen: v5e
topology: v5e:2x2
jax: 0.10.0
libtpu: 0.0.40
codegen_flags: <defaults>
</compile_context>

<pallas_src>
import jax
import jax.numpy as jnp
from jax import lax
from jax.experimental import pallas as pl
from jax.experimental.pallas import tpu as pltpu


_NT_DIMS = (((1,), (1,)), ((), ()))  # contract dim 1 of lhs with dim 1 of rhs


def fused_convblock_kernel(x_ref, w1_ref, b1_ref, w2_ref, b2_ref, o_ref):
    # x_ref : (1, H, W, C)    un-padded NHWC input tile (one batch element)
    # w1_ref: (9*C,  OC)      stage-1 weight, rows ordered (dy, dx, c)
    # b1_ref: (1, OC)
    # w2_ref: (9*OC, OC)      stage-2 weight, rows ordered (dy, dx, c)
    # b2_ref: (1, OC)
    # o_ref : (1, OC, H*W)    lane-dense output (reshaped to NCHW by wrapper)
    H, W, C = x_ref.shape[1], x_ref.shape[2], x_ref.shape[3]
    OC = o_ref.shape[1]

    def reflect_pad1(t):
        # ReflectionPad2d(1) on the two leading (spatial) axes of (h, w, ch).
        h, w = t.shape[0], t.shape[1]
        t = jnp.concatenate([t[:, 1:2, :], t, t[:, w - 2:w - 1, :]], axis=1)
        t = jnp.concatenate([t[1:2, :, :], t, t[h - 2:h - 1, :, :]], axis=0)
        return t

    def conv3x3_lrelu(t, w_flat, bias):
        # t: (H, W, ch) f32  ->  (H*W, OC) f32
        ch = t.shape[-1]
        tp = reflect_pad1(t)                                    # (H+2, W+2, ch)
        # im2col: 9 shifted windows; each reshape only merges leading dims
        # into the 8-aligned sublane axis (no lane relayout).
        cols = [tp[dy:dy + H, dx:dx + W, :].reshape(H * W, ch)
                for dy in range(3) for dx in range(3)]
        patch = jnp.concatenate(cols, axis=-1)                  # (H*W, 9*ch)
        acc = jnp.dot(patch, w_flat, preferred_element_type=jnp.float32)
        acc = acc + bias
        return jnp.where(acc >= 0, acc, 0.2 * acc)              # LeakyReLU(0.2)

    # Hoisted loads (once per grid step).
    w1 = w1_ref[...].astype(jnp.float32)
    b1 = b1_ref[...].astype(jnp.float32)
    w2 = w2_ref[...].astype(jnp.float32)
    b2 = b2_ref[...].astype(jnp.float32)

    x = x_ref[0].astype(jnp.float32)                            # (H, W, C)
    y1 = conv3x3_lrelu(x, w1, b1).reshape(H, W, OC)             # stays on-chip
    y2 = conv3x3_lrelu(y1, w2, b2)                              # (H*W, OC)

    # (H*W, OC) -> (OC, H*W) via an NT matmul against I_OC (MXU has slack),
    # giving an unmasked, lane-dense store and a transpose-free NCHW output.
    eye = jnp.eye(OC, dtype=jnp.float32)
    y2_t = lax.dot_general(eye, y2, dimension_numbers=_NT_DIMS,
                           preferred_element_type=jnp.float32)  # (OC, H*W)
    o_ref[...] = y2_t.reshape(1, OC, H * W).astype(o_ref.dtype)


def conv_block_forward(x_nchw, params):
    """Fused ConvBlock forward. x_nchw: (N, C, H, W) -> (N, C_out, H, W)."""
    w1, b1, w2, b2 = params          # w*: (3, 3, C, OC), b*: (OC,)
    N, C, H, W = x_nchw.shape
    OC = w1.shape[-1]
    assert w1.shape[2] == C and w2.shape[2] == OC == w2.shape[3], (
        "ConvBlock requires in_channels == out_channels")
    assert H >= 2 and W >= 2, "ReflectionPad2d(1) needs H, W >= 2"

    # Single layout-glue transpose at the entry (NCHW -> NHWC).  The output
    # side needs no transpose: the kernel emits (N, OC, H*W) directly.
    x_nhwc = jnp.transpose(x_nchw, (0, 2, 3, 1))
    w1f = w1.reshape(9 * C, OC)      # row order (dy, dx, c) == im2col order
    w2f = w2.reshape(9 * OC, OC)
    b1f = b1.reshape(1, OC)
    b2f = b2.reshape(1, OC)

    out_flat = pl.pallas_call(
        fused_convblock_kernel,
        out_shape=jax.ShapeDtypeStruct((N, OC, H * W), x_nchw.dtype),
        grid_spec=pltpu.PrefetchScalarGridSpec(
            num_scalar_prefetch=0,
            grid=(N,),
            in_specs=[
                pl.BlockSpec((1, H, W, C), lambda n: (n, 0, 0, 0)),
                pl.BlockSpec((9 * C, OC), lambda n: (0, 0)),
                pl.BlockSpec((1, OC), lambda n: (0, 0)),
                pl.BlockSpec((9 * OC, OC), lambda n: (0, 0)),
                pl.BlockSpec((1, OC), lambda n: (0, 0)),
            ],
            out_specs=pl.BlockSpec((1, OC, H * W), lambda n: (n, 0, 0)),
        ),
        compiler_params=pltpu.CompilerParams(
            dimension_semantics=("parallel",),
            vmem_limit_bytes=32 * 1024 * 1024,
        ),
    )(x_nhwc, w1f, b1f, w2f, b2f)

    # Row-major reshape (no copy, no transpose) back to NCHW.
    return out_flat.reshape(N, OC, H, W)


def conv_block_reference(x_nchw, params):
    """Pure-JAX reference mirroring the PyTorch module (correctness check)."""
    w1, b1, w2, b2 = params
    x = jnp.transpose(x_nchw, (0, 2, 3, 1))

    def stage(t, w, b):
        tp = jnp.pad(t, ((0, 0), (1, 1), (1, 1), (0, 0)), mode="reflect")
        y = lax.conv_general_dilated(
            tp, w, window_strides=(1, 1), padding="VALID",
            dimension_numbers=("NHWC", "HWIO", "NHWC"),
            precision=lax.Precision.HIGHEST)
        y = y + b
        return jnp.where(y >= 0, y, 0.2 * y)

    y = stage(stage(x, w1, b1), w2, b2)
    return jnp.transpose(y, (0, 3, 1, 2))


def init_params(key, in_channels, out_channels):
    # Deterministic synthetic init, built directly in (kh, kw, IC, OC) layout.
    k1, k2, k3, k4 = jax.random.split(key, 4)
    fan_in = in_channels * 3 * 3
    scale = 1.0 / jnp.sqrt(fan_in)
    w1 = jax.random.uniform(k1, (3, 3, in_channels, out_channels),
                            jnp.float32, -scale, scale)
    b1 = jax.random.uniform(k2, (out_channels,), jnp.float32, -scale, scale)
    w2 = jax.random.uniform(k3, (3, 3, out_channels, out_channels),
                            jnp.float32, -scale, scale)
    b2 = jax.random.uniform(k4, (out_channels,), jnp.float32, -scale, scale)
    return (w1, b1, w2, b2)


if __name__ == "__main__":
    key = jax.random.PRNGKey(0)
    kx, kp = jax.random.split(key)

    N, C, H, W = 2, 4, 16, 16   # module requires in_channels == out_channels
    x = jax.random.normal(kx, (N, C, H, W), dtype=jnp.float32)
    params = init_params(kp, C, C)

    out = jax.block_until_ready(conv_block_forward(x, params))
    assert out.shape == (N, C, H, W), out.shape

    ref = jax.block_until_ready(conv_block_reference(x, params))
    assert jnp.allclose(out, ref, atol=2e-2, rtol=2e-2), (
        float(jnp.max(jnp.abs(out - ref))))

    print("KERNEL_OK")
</pallas_src>

<mosaic_0001>
module attributes {stable_mosaic.version = 11 : i64} {
  func.func @fused_convblock_kernel(%arg0: i32, %arg1: memref<1x16x16x4xf32, #tpu.memory_space<vmem>>, %arg2: memref<36x4xf32, #tpu.memory_space<vmem>>, %arg3: memref<1x4xf32, #tpu.memory_space<vmem>>, %arg4: memref<36x4xf32, #tpu.memory_space<vmem>>, %arg5: memref<1x4xf32, #tpu.memory_space<vmem>>, %arg6: memref<1x4x256xf32, #tpu.memory_space<vmem>>) attributes {dimension_semantics = [#tpu.dimension_semantics<parallel>], iteration_bounds = array<i64: 2>, scalar_prefetch = 0 : i64, scratch_operands = 0 : i64, tpu.core_type = #tpu.core_type<tc>, window_params = [{transform_indices = @transform_0, window_bounds = array<i64: 1, 16, 16, 4>}, {pipeline_mode = #tpu.pipeline_mode<synchronous>, transform_indices = @transform_1, window_bounds = array<i64: 36, 4>}, {pipeline_mode = #tpu.pipeline_mode<synchronous>, transform_indices = @transform_2, window_bounds = array<i64: 1, 4>}, {pipeline_mode = #tpu.pipeline_mode<synchronous>, transform_indices = @transform_3, window_bounds = array<i64: 36, 4>}, {pipeline_mode = #tpu.pipeline_mode<synchronous>, transform_indices = @transform_4, window_bounds = array<i64: 1, 4>}, {transform_indices = @transform_5, window_bounds = array<i64: 1, 4, 256>}]} {
    %c0 = arith.constant 0 : index
    %c0_0 = arith.constant 0 : index
    %0 = vector.load %arg2[%c0, %c0_0] : memref<36x4xf32, #tpu.memory_space<vmem>>, vector<36x4xf32>
    %c0_1 = arith.constant 0 : index
    %c0_2 = arith.constant 0 : index
    %1 = vector.load %arg3[%c0_1, %c0_2] : memref<1x4xf32, #tpu.memory_space<vmem>>, vector<1x4xf32>
    %c0_3 = arith.constant 0 : index
    %c0_4 = arith.constant 0 : index
    %2 = vector.load %arg4[%c0_3, %c0_4] : memref<36x4xf32, #tpu.memory_space<vmem>>, vector<36x4xf32>
    %c0_5 = arith.constant 0 : index
    %c0_6 = arith.constant 0 : index
    %3 = vector.load %arg5[%c0_5, %c0_6] : memref<1x4xf32, #tpu.memory_space<vmem>>, vector<1x4xf32>
    %c0_7 = arith.constant 0 : index
    %c0_8 = arith.constant 0 : index
    %c0_9 = arith.constant 0 : index
    %c0_10 = arith.constant 0 : index
    %4 = vector.load %arg1[%c0_7, %c0_8, %c0_9, %c0_10] : memref<1x16x16x4xf32, #tpu.memory_space<vmem>>, vector<1x16x16x4xf32>
    %5 = vector.shape_cast %4 : vector<1x16x16x4xf32> to vector<16x16x4xf32>
    %6 = vector.extract_strided_slice %5 {offsets = [0, 1, 0], sizes = [16, 1, 4], strides = [1, 1, 1]} : vector<16x16x4xf32> to vector<16x1x4xf32>
    %7 = vector.extract_strided_slice %5 {offsets = [0, 14, 0], sizes = [16, 1, 4], strides = [1, 1, 1]} : vector<16x16x4xf32> to vector<16x1x4xf32>
    %8 = tpu.concatenate %6, %5, %7 in 1 : vector<16x1x4xf32>, vector<16x16x4xf32>, vector<16x1x4xf32> -> vector<16x18x4xf32>
    %9 = vector.extract_strided_slice %8 {offsets = [1, 0, 0], sizes = [1, 18, 4], strides = [1, 1, 1]} : vector<16x18x4xf32> to vector<1x18x4xf32>
    %10 = vector.extract_strided_slice %8 {offsets = [14, 0, 0], sizes = [1, 18, 4], strides = [1, 1, 1]} : vector<16x18x4xf32> to vector<1x18x4xf32>
    %11 = tpu.concatenate %9, %8, %10 in 0 : vector<1x18x4xf32>, vector<16x18x4xf32>, vector<1x18x4xf32> -> vector<18x18x4xf32>
    %12 = vector.extract_strided_slice %11 {offsets = [0, 0, 0], sizes = [16, 16, 4], strides = [1, 1, 1]} : vector<18x18x4xf32> to vector<16x16x4xf32>
    %13 = vector.shape_cast %12 : vector<16x16x4xf32> to vector<256x4xf32>
    %14 = vector.extract_strided_slice %11 {offsets = [0, 1, 0], sizes = [16, 16, 4], strides = [1, 1, 1]} : vector<18x18x4xf32> to vector<16x16x4xf32>
    %15 = vector.shape_cast %14 : vector<16x16x4xf32> to vector<256x4xf32>
    %16 = vector.extract_strided_slice %11 {offsets = [0, 2, 0], sizes = [16, 16, 4], strides = [1, 1, 1]} : vector<18x18x4xf32> to vector<16x16x4xf32>
    %17 = vector.shape_cast %16 : vector<16x16x4xf32> to vector<256x4xf32>
    %18 = vector.extract_strided_slice %11 {offsets = [1, 0, 0], sizes = [16, 16, 4], strides = [1, 1, 1]} : vector<18x18x4xf32> to vector<16x16x4xf32>
    %19 = vector.shape_cast %18 : vector<16x16x4xf32> to vector<256x4xf32>
    %20 = vector.extract_strided_slice %11 {offsets = [1, 1, 0], sizes = [16, 16, 4], strides = [1, 1, 1]} : vector<18x18x4xf32> to vector<16x16x4xf32>
    %21 = vector.shape_cast %20 : vector<16x16x4xf32> to vector<256x4xf32>
    %22 = vector.extract_strided_slice %11 {offsets = [1, 2, 0], sizes = [16, 16, 4], strides = [1, 1, 1]} : vector<18x18x4xf32> to vector<16x16x4xf32>
    %23 = vector.shape_cast %22 : vector<16x16x4xf32> to vector<256x4xf32>
    %24 = vector.extract_strided_slice %11 {offsets = [2, 0, 0], sizes = [16, 16, 4], strides = [1, 1, 1]} : vector<18x18x4xf32> to vector<16x16x4xf32>
    %25 = vector.shape_cast %24 : vector<16x16x4xf32> to vector<256x4xf32>
    %26 = vector.extract_strided_slice %11 {offsets = [2, 1, 0], sizes = [16, 16, 4], strides = [1, 1, 1]} : vector<18x18x4xf32> to vector<16x16x4xf32>
    %27 = vector.shape_cast %26 : vector<16x16x4xf32> to vector<256x4xf32>
    %28 = vector.extract_strided_slice %11 {offsets = [2, 2, 0], sizes = [16, 16, 4], strides = [1, 1, 1]} : vector<18x18x4xf32> to vector<16x16x4xf32>
    %29 = vector.shape_cast %28 : vector<16x16x4xf32> to vector<256x4xf32>
    %30 = tpu.concatenate %13, %15, %17, %19, %21, %23, %25, %27, %29 in 1 : vector<256x4xf32>, vector<256x4xf32>, vector<256x4xf32>, vector<256x4xf32>, vector<256x4xf32>, vector<256x4xf32>, vector<256x4xf32>, vector<256x4xf32>, vector<256x4xf32> -> vector<256x36xf32>
    %cst = arith.constant dense<0.000000e+00> : vector<256x4xf32>
    %31 = tpu.matmul %30, %0, %cst {dimension_numbers = #tpu.dot_dimension_numbers<[1], [0], [0], [1], [0, 0, 1, 1], [], []>} : vector<256x36xf32>, vector<36x4xf32>, vector<256x4xf32> -> vector<256x4xf32>
    %32 = vector.broadcast %1 : vector<1x4xf32> to vector<256x4xf32>
    %33 = arith.addf %31, %32 : vector<256x4xf32>
    %cst_11 = arith.constant 0.000000e+00 : f32
    %34 = vector.broadcast %cst_11 : f32 to vector<256x4xf32>
    %35 = arith.cmpf oge, %33, %34 : vector<256x4xf32>
    %cst_12 = arith.constant 2.000000e-01 : f32
    %36 = vector.broadcast %cst_12 : f32 to vector<256x4xf32>
    %37 = arith.mulf %36, %33 : vector<256x4xf32>
    %38 = arith.select %35, %33, %37 : vector<256x4xi1>, vector<256x4xf32>
    %39 = vector.shape_cast %38 : vector<256x4xf32> to vector<16x16x4xf32>
    %40 = vector.extract_strided_slice %39 {offsets = [0, 1, 0], sizes = [16, 1, 4], strides = [1, 1, 1]} : vector<16x16x4xf32> to vector<16x1x4xf32>
    %41 = vector.extract_strided_slice %39 {offsets = [0, 14, 0], sizes = [16, 1, 4], strides = [1, 1, 1]} : vector<16x16x4xf32> to vector<16x1x4xf32>
    %42 = tpu.concatenate %40, %39, %41 in 1 : vector<16x1x4xf32>, vector<16x16x4xf32>, vector<16x1x4xf32> -> vector<16x18x4xf32>
    %43 = vector.extract_strided_slice %42 {offsets = [1, 0, 0], sizes = [1, 18, 4], strides = [1, 1, 1]} : vector<16x18x4xf32> to vector<1x18x4xf32>
    %44 = vector.extract_strided_slice %42 {offsets = [14, 0, 0], sizes = [1, 18, 4], strides = [1, 1, 1]} : vector<16x18x4xf32> to vector<1x18x4xf32>
    %45 = tpu.concatenate %43, %42, %44 in 0 : vector<1x18x4xf32>, vector<16x18x4xf32>, vector<1x18x4xf32> -> vector<18x18x4xf32>
    %46 = vector.extract_strided_slice %45 {offsets = [0, 0, 0], sizes = [16, 16, 4], strides = [1, 1, 1]} : vector<18x18x4xf32> to vector<16x16x4xf32>
    %47 = vector.shape_cast %46 : vector<16x16x4xf32> to vector<256x4xf32>
    %48 = vector.extract_strided_slice %45 {offsets = [0, 1, 0], sizes = [16, 16, 4], strides = [1, 1, 1]} : vector<18x18x4xf32> to vector<16x16x4xf32>
    %49 = vector.shape_cast %48 : vector<16x16x4xf32> to vector<256x4xf32>
    %50 = vector.extract_strided_slice %45 {offsets = [0, 2, 0], sizes = [16, 16, 4], strides = [1, 1, 1]} : vector<18x18x4xf32> to vector<16x16x4xf32>
    %51 = vector.shape_cast %50 : vector<16x16x4xf32> to vector<256x4xf32>
    %52 = vector.extract_strided_slice %45 {offsets = [1, 0, 0], sizes = [16, 16, 4], strides = [1, 1, 1]} : vector<18x18x4xf32> to vector<16x16x4xf32>
    %53 = vector.shape_cast %52 : vector<16x16x4xf32> to vector<256x4xf32>
    %54 = vector.extract_strided_slice %45 {offsets = [1, 1, 0], sizes = [16, 16, 4], strides = [1, 1, 1]} : vector<18x18x4xf32> to vector<16x16x4xf32>
    %55 = vector.shape_cast %54 : vector<16x16x4xf32> to vector<256x4xf32>
    %56 = vector.extract_strided_slice %45 {offsets = [1, 2, 0], sizes = [16, 16, 4], strides = [1, 1, 1]} : vector<18x18x4xf32> to vector<16x16x4xf32>
    %57 = vector.shape_cast %56 : vector<16x16x4xf32> to vector<256x4xf32>
    %58 = vector.extract_strided_slice %45 {offsets = [2, 0, 0], sizes = [16, 16, 4], strides = [1, 1, 1]} : vector<18x18x4xf32> to vector<16x16x4xf32>
    %59 = vector.shape_cast %58 : vector<16x16x4xf32> to vector<256x4xf32>
    %60 = vector.extract_strided_slice %45 {offsets = [2, 1, 0], sizes = [16, 16, 4], strides = [1, 1, 1]} : vector<18x18x4xf32> to vector<16x16x4xf32>
    %61 = vector.shape_cast %60 : vector<16x16x4xf32> to vector<256x4xf32>
    %62 = vector.extract_strided_slice %45 {offsets = [2, 2, 0], sizes = [16, 16, 4], strides = [1, 1, 1]} : vector<18x18x4xf32> to vector<16x16x4xf32>
    %63 = vector.shape_cast %62 : vector<16x16x4xf32> to vector<256x4xf32>
    %64 = tpu.concatenate %47, %49, %51, %53, %55, %57, %59, %61, %63 in 1 : vector<256x4xf32>, vector<256x4xf32>, vector<256x4xf32>, vector<256x4xf32>, vector<256x4xf32>, vector<256x4xf32>, vector<256x4xf32>, vector<256x4xf32>, vector<256x4xf32> -> vector<256x36xf32>
    %cst_13 = arith.constant dense<0.000000e+00> : vector<256x4xf32>
    %65 = tpu.matmul %64, %2, %cst_13 {dimension_numbers = #tpu.dot_dimension_numbers<[1], [0], [0], [1], [0, 0, 1, 1], [], []>} : vector<256x36xf32>, vector<36x4xf32>, vector<256x4xf32> -> vector<256x4xf32>
    %66 = vector.broadcast %3 : vector<1x4xf32> to vector<256x4xf32>
    %67 = arith.addf %65, %66 : vector<256x4xf32>
    %cst_14 = arith.constant 0.000000e+00 : f32
    %68 = vector.broadcast %cst_14 : f32 to vector<256x4xf32>
    %69 = arith.cmpf oge, %67, %68 : vector<256x4xf32>
    %cst_15 = arith.constant 2.000000e-01 : f32
    %70 = vector.broadcast %cst_15 : f32 to vector<256x4xf32>
    %71 = arith.mulf %70, %67 : vector<256x4xf32>
    %72 = arith.select %69, %67, %71 : vector<256x4xi1>, vector<256x4xf32>
    %73 = tpu.iota {dimensions = array<i32: 0>} : vector<4x4xi32>
    %74 = tpu.iota {dimensions = array<i32: 1>} : vector<4x4xi32>
    %c0_i32 = arith.constant 0 : i32
    %75 = vector.broadcast %c0_i32 : i32 to vector<4x4xi32>
    %76 = arith.addi %73, %75 : vector<4x4xi32>
    %77 = arith.cmpi eq, %76, %74 : vector<4x4xi32>
    %78 = arith.extui %77 : vector<4x4xi1> to vector<4x4xi32>
    %79 = arith.sitofp %78 : vector<4x4xi32> to vector<4x4xf32>
    %cst_16 = arith.constant dense<0.000000e+00> : vector<4x256xf32>
    %80 = tpu.matmul %79, %72, %cst_16 {dimension_numbers = #tpu.dot_dimension_numbers<[1], [1], [0], [0], [0, 0, 1, 0], [], []>} : vector<4x4xf32>, vector<256x4xf32>, vector<4x256xf32> -> vector<4x256xf32>
    %81 = vector.shape_cast %80 : vector<4x256xf32> to vector<1x4x256xf32>
    %c0_17 = arith.constant 0 : index
    %c0_18 = arith.constant 0 : index
    %c0_19 = arith.constant 0 : index
    %82 = vector.load %arg6[%c0_17, %c0_18, %c0_19] : memref<1x4x256xf32, #tpu.memory_space<vmem>>, vector<1x4x256xf32>
    tpu.vector_store %arg6[%c0_17, %c0_18, %c0_19], %81 {strides = array<i32>} : memref<1x4x256xf32, #tpu.memory_space<vmem>>, vector<1x4x256xf32>,
    return
  }
  func.func @transform_0(%arg0: i32) -> (i32, i32, i32, i32) {
    %c0_i32 = arith.constant 0 : i32
    %c0_i32_0 = arith.constant 0 : i32
    %c0_i32_1 = arith.constant 0 : i32
    %c0_i32_2 = arith.constant 0 : i32
    return %arg0, %c0_i32, %c0_i32_0, %c0_i32_1 : i32, i32, i32, i32
  }
  func.func @transform_1(%arg0: i32) -> (i32, i32) {
    %c0_i32 = arith.constant 0 : i32
    %c0_i32_0 = arith.constant 0 : i32
    %c0_i32_1 = arith.constant 0 : i32
    return %c0_i32, %c0_i32_0 : i32, i32
  }
  func.func @transform_2(%arg0: i32) -> (i32, i32) {
    %c0_i32 = arith.constant 0 : i32
    %c0_i32_0 = arith.constant 0 : i32
    %c0_i32_1 = arith.constant 0 : i32
    return %c0_i32, %c0_i32_0 : i32, i32
  }
  func.func @transform_3(%arg0: i32) -> (i32, i32) {
    %c0_i32 = arith.constant 0 : i32
    %c0_i32_0 = arith.constant 0 : i32
    %c0_i32_1 = arith.constant 0 : i32
    return %c0_i32, %c0_i32_0 : i32, i32
  }
  func.func @transform_4(%arg0: i32) -> (i32, i32) {
    %c0_i32 = arith.constant 0 : i32
    %c0_i32_0 = arith.constant 0 : i32
    %c0_i32_1 = arith.constant 0 : i32
    return %c0_i32, %c0_i32_0 : i32, i32
  }
  func.func @transform_5(%arg0: i32) -> (i32, i32, i32) {
    %c0_i32 = arith.constant 0 : i32
    %c0_i32_0 = arith.constant 0 : i32
    %c0_i32_1 = arith.constant 0 : i32
    return %arg0, %c0_i32, %c0_i32_0 : i32, i32, i32
  }
}

</mosaic_0001>

<llo_original>
// kernel: tpu_custom_call.1
$region0: #{tpu_custom_call.1}
  #allocation0 [shape = 'u32[]', space=smem, size = 0x4, offset = 0x4, fixed_abs, tag = 'smem constant byte address 0x4 - core index']
  #allocation1 [shape = 'u32[72,128]{1,0:T(1,128)}', space=vmem, size = 0x9000, scoped, tag = 'internal scratch']
  %s0 = inlined_call_operand.vmem [shape: f32[2,16,16,4], index: 0, kind: input, shape index: {}]
  %s1 = inlined_call_operand.vmem [shape: f32[36,4], index: 1, kind: input, shape index: {}]
  %s2 = inlined_call_operand.vmem [shape: f32[1,4], index: 2, kind: input, shape index: {}]
  %s3 = inlined_call_operand.vmem [shape: f32[36,4], index: 3, kind: input, shape index: {}]
  %s4 = inlined_call_operand.vmem [shape: f32[1,4], index: 4, kind: input, shape index: {}]
  %s5 = inlined_call_operand.hbm [shape: f32[2,4,256], index: 5, kind: output, shape index: {}]
  %s6 = sld [smem:[#allocation0]]
  $region53: #{tpu_custom_call.1} parent=0
    _
  %s8 = ssub.s32 1, %s6
  %s9 = scalar_select 0, %s8, %s6
  $region1: #{tpu_custom_call.1} parent=0
    #allocation2 [shape = 'u8[8192]{0}', space=vmem, size = 0x2000, scoped, tag = 'output window, operand 0']
    #allocation3 [shape = 's32[2]{0}', space=sflag, size = 0x8, scoped, tag = 'scoped memory for tpu_custom_call.1']
    %10 = vsyncpa [#allocation3], 0
    %s11 = scalar_lea.sflag [#allocation3], 1
    %12 = vsyncpa %s11, 0
    loop: start=0, step=1, limit=4
    $region2: #{tpu_custom_call.1} parent=1 // loop_pre_header
      _
    $region3: #{tpu_custom_call.1} parent=1 // loop_header
      %s14 = sphi 0, %s18
      %p15 = scmp.ge.s32.totalorder %s14, 4
      %s24 = sphi 0, %s26
      %s27 = sphi 0, %s24
      %s28 = sphi 0, %s27
      %s44 = sphi 0, %s28
      %s48 = sphi 0, %s48
      %s50 = sphi 0, %s48
      %s51 = sphi 0, %s50
      %s65 = sphi 0, %s51
      %s69 = sphi 0, %s69
      %s71 = sphi 0, %s69
      %s72 = sphi 0, %s71
      %s86 = sphi 0, %s72
      %s90 = sphi 0, %s90
      %s92 = sphi 0, %s90
      %s93 = sphi 0, %s92
      %s107 = sphi 0, %s93
      %s111 = sphi 0, %s111
      %s113 = sphi 0, %s111
      %s114 = sphi 0, %s113
      %s128 = sphi 0, %s114
      %s134 = sphi 0, %s136
      %s137 = sphi 0, %s134
      %s138 = sphi 0, %s137
      %s154 = sphi 0, %s138
    $region4: #{tpu_custom_call.1} parent=1 // loop_header_branch
      %17 = sbr.rel (%p15) target = $region8
    $region5: #{tpu_custom_call.1} parent=1 // loop_body
      %s19 = ssub.s32 %s14, 1
      %s20 = ssub.s32 %s14, 2
      %s21 = sadd.s32 %s14, 1
      %s22 = ssub.s32 %s14, %s21
      %p23 = scmp.eq.s32.totalorder %s22, 0
      %s25 = sadd.s32 %s24, 1
      %s26 = scalar_select %p23, %s24, %s25
      %p29 = pneg %p23
      %p30 = scmp.eq.s32.totalorder %s14, 1
      %p31 = por %p29, %p30
      %p32 = scmp.ne.s32.totalorder %s24, %s27
      %p33 = scmp.eq.s32.totalorder %s14, 0
      %p34 = por %p32, %p33
      %p35 = scmp.ne.s32.totalorder %s24, %s27
      %p36 = scmp.eq.s32.totalorder %s19, 1
      %p37 = por %p35, %p36
      %p38 = scmp.ne.s32.totalorder %s27, %s28
      %p39 = scmp.eq.s32.totalorder %s19, 0
      %p40 = por %p38, %p39
      %p41 = scmp.ne.s32.totalorder %s27, %s28
      %p42 = scmp.eq.s32.totalorder %s20, 1
      %p43 = por %p41, %p42
      %p45 = scmp.ne.s32.totalorder %s28, %s44
      %p46 = scmp.eq.s32.totalorder %s20, 0
      %p47 = por %p45, %p46
      %s49 = sadd.s32 %s48, 1
      %p52 = scmp.eq.s32.totalorder %s14, 1
      %p53 = scmp.ne.s32.totalorder %s48, %s50
      %p54 = scmp.eq.s32.totalorder %s14, 0
      %p55 = por %p53, %p54
      %p56 = scmp.ne.s32.totalorder %s48, %s50
      %p57 = scmp.eq.s32.totalorder %s19, 1
      %p58 = por %p56, %p57
      %p59 = scmp.ne.s32.totalorder %s50, %s51
      %p60 = scmp.eq.s32.totalorder %s19, 0
      %p61 = por %p59, %p60
      %p62 = scmp.ne.s32.totalorder %s50, %s51
      %p63 = scmp.eq.s32.totalorder %s20, 1
      %p64 = por %p62, %p63
      %p66 = scmp.ne.s32.totalorder %s51, %s65
      %p67 = scmp.eq.s32.totalorder %s20, 0
      %p68 = por %p66, %p67
      %s70 = sadd.s32 %s69, 1
      %p73 = scmp.eq.s32.totalorder %s14, 1
      %p74 = scmp.ne.s32.totalorder %s69, %s71
      %p75 = scmp.eq.s32.totalorder %s14, 0
      %p76 = por %p74, %p75
      %p77 = scmp.ne.s32.totalorder %s69, %s71
      %p78 = scmp.eq.s32.totalorder %s19, 1
      %p79 = por %p77, %p78
      %p80 = scmp.ne.s32.totalorder %s71, %s72
      %p81 = scmp.eq.s32.totalorder %s19, 0
      %p82 = por %p80, %p81
      %p83 = scmp.ne.s32.totalorder %s71, %s72
      %p84 = scmp.eq.s32.totalorder %s20, 1
      %p85 = por %p83, %p84
      %p87 = scmp.ne.s32.totalorder %s72, %s86
      %p88 = scmp.eq.s32.totalorder %s20, 0
      %p89 = por %p87, %p88
      %s91 = sadd.s32 %s90, 1
      %p94 = scmp.eq.s32.totalorder %s14, 1
      %p95 = scmp.ne.s32.totalorder %s90, %s92
      %p96 = scmp.eq.s32.totalorder %s14, 0
      %p97 = por %p95, %p96
      %p98 = scmp.ne.s32.totalorder %s90, %s92
      %p99 = scmp.eq.s32.totalorder %s19, 1
      %p100 = por %p98, %p99
      %p101 = scmp.ne.s32.totalorder %s92, %s93
      %p102 = scmp.eq.s32.totalorder %s19, 0
      %p103 = por %p101, %p102
      %p104 = scmp.ne.s32.totalorder %s92, %s93
      %p105 = scmp.eq.s32.totalorder %s20, 1
      %p106 = por %p104, %p105
      %p108 = scmp.ne.s32.totalorder %s93, %s107
      %p109 = scmp.eq.s32.totalorder %s20, 0
      %p110 = por %p108, %p109
      %s112 = sadd.s32 %s111, 1
      %p115 = scmp.eq.s32.totalorder %s14, 1
      %p116 = scmp.ne.s32.totalorder %s111, %s113
      %p117 = scmp.eq.s32.totalorder %s14, 0
      %p118 = por %p116, %p117
      %p119 = scmp.ne.s32.totalorder %s111, %s113
      %p120 = scmp.eq.s32.totalorder %s19, 1
      %p121 = por %p119, %p120
      %p122 = scmp.ne.s32.totalorder %s113, %s114
      %p123 = scmp.eq.s32.totalorder %s19, 0
      %p124 = por %p122, %p123
      %p125 = scmp.ne.s32.totalorder %s113, %s114
      %p126 = scmp.eq.s32.totalorder %s20, 1
      %p127 = por %p125, %p126
      %p129 = scmp.ne.s32.totalorder %s114, %s128
      %p130 = scmp.eq.s32.totalorder %s20, 0
      %p131 = por %p129, %p130
      %s132 = ssub.s32 %s14, %s21
      %p133 = scmp.eq.s32.totalorder %s132, 0
      %s135 = sadd.s32 %s134, 1
      %s136 = scalar_select %p133, %s134, %s135
      %p139 = pneg %p133
      %p140 = scmp.eq.s32.totalorder %s14, 1
      %p141 = por %p139, %p140
      %p142 = scmp.ne.s32.totalorder %s134, %s137
      %p143 = scmp.eq.s32.totalorder %s14, 0
      %p144 = por %p142, %p143
      %p145 = scmp.ne.s32.totalorder %s134, %s137
      %p146 = scmp.eq.s32.totalorder %s19, 1
      %p147 = por %p145, %p146
      %p148 = scmp.ne.s32.totalorder %s137, %s138
      %p149 = scmp.eq.s32.totalorder %s19, 0
      %p150 = por %p148, %p149
      %p151 = scmp.ne.s32.totalorder %s137, %s138
      %p152 = scmp.eq.s32.totalorder %s20, 1
      %p153 = por %p151, %p152
      %p155 = scmp.ne.s32.totalorder %s138, %s154
      %p156 = scmp.eq.s32.totalorder %s20, 0
      %p157 = por %p155, %p156
      %p158 = scmp.le.s32.totalorder 1, %s14
      %p159 = scmp.lt.s32.totalorder %s14, 3
      %p160 = pnand %p158, %p159
      %p161 = pneg %p160
      // Predicated region
      $region9: #{tpu_custom_call.1} parent=5 // pred_check
        _
      $region10: #{tpu_custom_call.1} parent=5 // pred_check_branch
        %163 = sbr.rel (%p160) target = $region12
      $region11: #{tpu_custom_call.1} parent=5 // pred_region
        %s164 = ssub.s32 %s14, 1
        // Predicated region
        $region13: #{tpu_custom_call.1} parent=11 // pred_check
          %p165 = pneg %p61
        $region14: #{tpu_custom_call.1} parent=11 // pred_check_branch
          %167 = sbr.rel (%p165) target = $region16
        $region15: #{tpu_custom_call.1} parent=11 // pred_region
          _
        $region16: #{tpu_custom_call.1} parent=11 // pred_fallthru
          _
        // Predicated region
        $region17: #{tpu_custom_call.1} parent=11 // pred_check
          %p168 = pneg %p82
        $region18: #{tpu_custom_call.1} parent=11 // pred_check_branch
          %170 = sbr.rel (%p168) target = $region20
        $region19: #{tpu_custom_call.1} parent=11 // pred_region
          _
        $region20: #{tpu_custom_call.1} parent=11 // pred_fallthru
          _
        // Predicated region
        $region21: #{tpu_custom_call.1} parent=11 // pred_check
          %p171 = pneg %p103
        $region22: #{tpu_custom_call.1} parent=11 // pred_check_branch
          %173 = sbr.rel (%p171) target = $region24
        $region23: #{tpu_custom_call.1} parent=11 // pred_region
          _
        $region24: #{tpu_custom_call.1} parent=11 // pred_fallthru
          _
        // Predicated region
        $region25: #{tpu_custom_call.1} parent=11 // pred_check
          %p174 = pneg %p124
        $region26: #{tpu_custom_call.1} parent=11 // pred_check_branch
          %176 = sbr.rel (%p174) target = $region28
        $region27: #{tpu_custom_call.1} parent=11 // pred_region
          _
        $region28: #{tpu_custom_call.1} parent=11 // pred_fallthru
          _
      $region12: #{tpu_custom_call.1} parent=5 // pred_fallthru
        _
      %p177 = scmp.lt.s32.totalorder %s14, 2
      // Predicated region
      $region29: #{tpu_custom_call.1} parent=5 // pred_check
        %p178 = pneg %p177
      $region30: #{tpu_custom_call.1} parent=5 // pred_check_branch
        %180 = sbr.rel (%p178) target = $region32
      $region31: #{tpu_custom_call.1} parent=5 // pred_region
        // Predicated region
        $region33: #{tpu_custom_call.1} parent=31 // pred_check
          %p181 = pneg %p34
        $region34: #{tpu_custom_call.1} parent=31 // pred_check_branch
          %183 = sbr.rel (%p181) target = $region36
        $region35: #{tpu_custom_call.1} parent=31 // pred_region
          %p184 = scmp.lt.s32.totalorder %s14, 1
          %s185 = scalar_select %p184, %s14, 1
          %s186 = smul.addr %s185, 32
          %s187 = smul.addr %s186, 8
          %s188 = scalar_lea.vmem %s0, %s187
        $region36: #{tpu_custom_call.1} parent=31 // pred_fallthru
          _
      $region32: #{tpu_custom_call.1} parent=5 // pred_fallthru
        _
      %p189 = scmp.le.s32.totalorder 1, %s14
      %p190 = scmp.lt.s32.totalorder %s14, 3
      %p191 = pnand %p189, %p190
      %p192 = pneg %p191
      // Predicated region
      $region37: #{tpu_custom_call.1} parent=5 // pred_check
        _
      $region38: #{tpu_custom_call.1} parent=5 // pred_check_branch
        %194 = sbr.rel (%p191) target = $region40
      $region39: #{tpu_custom_call.1} parent=5 // pred_region
        %s195 = ssub.s32 %s14, 1
        %p196 = scmp.lt.s32.totalorder %s19, 1
        %s197 = scalar_select %p196, %s19, 1
        %s198 = smul.addr %s197, 32
        %s199 = smul.addr %s198, 8
        %s200 = scalar_lea.vmem %s0, %s199
        %p201 = pneg %p40
        %p202 = pneg %p37
        %p203 = pneg %p61
        %p204 = pneg %p58
        %p205 = pneg %p82
        %p206 = pneg %p79
        %p207 = pneg %p103
        %p208 = pneg %p100
        %p209 = pneg %p124
        %p210 = pneg %p121
        %p211 = pneg %p150
        %p212 = pneg %p147
        %s213 = sand.u32 %s137, 1
        %s214 = scalar_lea.sflag [#allocation3], %s213
        %s215 = sand.u32 %s137, 1
        %s216 = smul.addr %s215, 8
        %s217 = scalar_lea.vmem [#allocation2], %s216
        %p218 = scmp.lt.s32.totalorder %s19, 1
        %s219 = scalar_select %p218, %s19, 1
        %s220 = smul.addr %s219, 32
        %s221 = smul.addr %s220, 8
        %s222 = scalar_lea.vmem %s0, %s221
        %v223 = vld [vmem:[%s1] sm:$0xff]
        %v224 = vld [vmem:[%s1 + $0x8] sm:$0xff]
        %v225 = vld [vmem:[%s1 + $0x10] sm:$0xff]
        %v226 = vld [vmem:[%s1 + $0x18] sm:$0xff]
        %v227 = vld [vmem:[%s1 + $0x20] sm:$0xf]
        %v228 = vld [vmem:[%s2] sm:$0x1]
        %v229 = vld [vmem:[%s3] sm:$0xff]
        %v230 = vld [vmem:[%s3 + $0x8] sm:$0xff]
        %v231 = vld [vmem:[%s3 + $0x10] sm:$0xff]
        %v232 = vld [vmem:[%s3 + $0x18] sm:$0xff]
        %v233 = vld [vmem:[%s3 + $0x20] sm:$0xf]
        %v234 = vld [vmem:[%s4] sm:$0x1]
        %v235 = vld [vmem:[%s222] sm:$0xff]
        %v236 = vld [vmem:[%s222 + $0x8] sm:$0xff]
        %v237 = vld [vmem:[%s222 + $0x10] sm:$0xff]
        %v238 = vld [vmem:[%s222 + $0x18] sm:$0xff]
        %v239 = vld [vmem:[%s222 + $0x20] sm:$0xff]
        %v240 = vld [vmem:[%s222 + $0x28] sm:$0xff]
        %v241 = vld [vmem:[%s222 + $0x30] sm:$0xff]
        %v242 = vld [vmem:[%s222 + $0x38] sm:$0xff]
        %v243 = vld [vmem:[%s222 + $0x40] sm:$0xff]
        %v244 = vld [vmem:[%s222 + $0x48] sm:$0xff]
        %v245 = vld [vmem:[%s222 + $0x50] sm:$0xff]
        %v246 = vld [vmem:[%s222 + $0x58] sm:$0xff]
        %v247 = vld [vmem:[%s222 + $0x60] sm:$0xff]
        %v248 = vld [vmem:[%s222 + $0x68] sm:$0xff]
        %v249 = vld [vmem:[%s222 + $0x70] sm:$0xff]
        %v250 = vld [vmem:[%s222 + $0x78] sm:$0xff]
        %v251 = vld [vmem:[%s222 + $0x80] sm:$0xff]
        %v252 = vld [vmem:[%s222 + $0x88] sm:$0xff]
        %v253 = vld [vmem:[%s222 + $0x90] sm:$0xff]
        %v254 = vld [vmem:[%s222 + $0x98] sm:$0xff]
        %v255 = vld [vmem:[%s222 + $0xa0] sm:$0xff]
        %v256 = vld [vmem:[%s222 + $0xa8] sm:$0xff]
        %v257 = vld [vmem:[%s222 + $0xb0] sm:$0xff]
        %v258 = vld [vmem:[%s222 + $0xb8] sm:$0xff]
        %v259 = vld [vmem:[%s222 + $0xc0] sm:$0xff]
        %v260 = vld [vmem:[%s222 + $0xc8] sm:$0xff]
        %v261 = vld [vmem:[%s222 + $0xd0] sm:$0xff]
        %v262 = vld [vmem:[%s222 + $0xd8] sm:$0xff]
        %v263 = vld [vmem:[%s222 + $0xe0] sm:$0xff]
        %v264 = vld [vmem:[%s222 + $0xe8] sm:$0xff]
        %v265 = vld [vmem:[%s222 + $0xf0] sm:$0xff]
        %v266 = vld [vmem:[%s222 + $0xf8] sm:$0xff]
        %v283 = vrot.slane %v235, 1
        %v284 = vrot.slane %v237, 1
        %v285 = vrot.slane %v239, 1
        %v286 = vrot.slane %v241, 1
        %v287 = vrot.slane %v243, 1
        %v288 = vrot.slane %v245, 1
        %v289 = vrot.slane %v247, 1
        %v290 = vrot.slane %v249, 1
        %v291 = vrot.slane %v251, 1
        %v292 = vrot.slane %v253, 1
        %v293 = vrot.slane %v255, 1
        %v294 = vrot.slane %v257, 1
        %v295 = vrot.slane %v259, 1
        %v296 = vrot.slane %v261, 1
        %v297 = vrot.slane %v263, 1
        %v298 = vrot.slane %v265, 1
        %vm331 = vcmask 1040384
        %v332 = vrot.slane %v235, 7
        %v333 = vrot.slane %v236, 7
        %v334 = vsel %vm331, %v332, %v333
        %v335 = vrot.slane %v237, 7
        %v336 = vrot.slane %v238, 7
        %v337 = vsel %vm331, %v335, %v336
        %v338 = vrot.slane %v239, 7
        %v339 = vrot.slane %v240, 7
        %v340 = vsel %vm331, %v338, %v339
        %v341 = vrot.slane %v241, 7
        %v342 = vrot.slane %v242, 7
        %v343 = vsel %vm331, %v341, %v342
        %v344 = vrot.slane %v243, 7
        %v345 = vrot.slane %v244, 7
        %v346 = vsel %vm331, %v344, %v345
        %v347 = vrot.slane %v245, 7
        %v348 = vrot.slane %v246, 7
        %v349 = vsel %vm331, %v347, %v348
        %v350 = vrot.slane %v247, 7
        %v351 = vrot.slane %v248, 7
        %v352 = vsel %vm331, %v350, %v351
        %v353 = vrot.slane %v249, 7
        %v354 = vrot.slane %v250, 7
        %v355 = vsel %vm331, %v353, %v354
        %v356 = vrot.slane %v251, 7
        %v357 = vrot.slane %v252, 7
        %v358 = vsel %vm331, %v356, %v357
        %v359 = vrot.slane %v253, 7
        %v360 = vrot.slane %v254, 7
        %v361 = vsel %vm331, %v359, %v360
        %v362 = vrot.slane %v255, 7
        %v363 = vrot.slane %v256, 7
        %v364 = vsel %vm331, %v362, %v363
        %v365 = vrot.slane %v257, 7
        %v366 = vrot.slane %v258, 7
        %v367 = vsel %vm331, %v365, %v366
        %v368 = vrot.slane %v259, 7
        %v369 = vrot.slane %v260, 7
        %v370 = vsel %vm331, %v368, %v369
        %v371 = vrot.slane %v261, 7
        %v372 = vrot.slane %v262, 7
        %v373 = vsel %vm331, %v371, %v372
        %v374 = vrot.slane %v263, 7
        %v375 = vrot.slane %v264, 7
        %v376 = vsel %vm331, %v374, %v375
        %v377 = vrot.slane %v265, 7
        %v378 = vrot.slane %v266, 7
        %v379 = vsel %vm331, %v377, %v378
        %v427 = vrot.slane %v236, 5
        %v428 = vrot.slane %v238, 5
        %v429 = vrot.slane %v240, 5
        %v430 = vrot.slane %v242, 5
        %v431 = vrot.slane %v244, 5
        %v432 = vrot.slane %v246, 5
        %v433 = vrot.slane %v248, 5
        %v434 = vrot.slane %v250, 5
        %v435 = vrot.slane %v252, 5
        %v436 = vrot.slane %v254, 5
        %v437 = vrot.slane %v256, 5
        %v438 = vrot.slane %v258, 5
        %v439 = vrot.slane %v260, 5
        %v440 = vrot.slane %v262, 5
        %v441 = vrot.slane %v264, 5
        %v442 = vrot.slane %v266, 5
        %v459 = vsel %vm331, %v283, %v332
        %v460 = vsel %vm331, %v284, %v335
        %v461 = vsel %vm331, %v285, %v338
        %v462 = vsel %vm331, %v286, %v341
        %v463 = vsel %vm331, %v287, %v344
        %v464 = vsel %vm331, %v288, %v347
        %v465 = vsel %vm331, %v289, %v350
        %v466 = vsel %vm331, %v290, %v353
        %v467 = vsel %vm331, %v291, %v356
        %v468 = vsel %vm331, %v292, %v359
        %v469 = vsel %vm331, %v293, %v362
        %v470 = vsel %vm331, %v294, %v365
        %v471 = vsel %vm331, %v295, %v368
        %v472 = vsel %vm331, %v296, %v371
        %v473 = vsel %vm331, %v297, %v374
        %v474 = vsel %vm331, %v298, %v377
        %v475 = vsel %vm331, %v333, %v427
        %v476 = vsel %vm331, %v336, %v428
        %v477 = vsel %vm331, %v339, %v429
        %v478 = vsel %vm331, %v342, %v430
        %v479 = vsel %vm331, %v345, %v431
        %v480 = vsel %vm331, %v348, %v432
        %v481 = vsel %vm331, %v351, %v433
        %v482 = vsel %vm331, %v354, %v434
        %v483 = vsel %vm331, %v357, %v435
        %v484 = vsel %vm331, %v360, %v436
        %v485 = vsel %vm331, %v363, %v437
        %v486 = vsel %vm331, %v366, %v438
        %v487 = vsel %vm331, %v369, %v439
        %v488 = vsel %vm331, %v372, %v440
        %v489 = vsel %vm331, %v375, %v441
        %v490 = vsel %vm331, %v378, %v442
        %vm521 = vcmask 1046528
        %v522 = vrot.slane %v460, 1
        %v523 = vrot.slane %v337, 1
        %v524 = vsel %vm521, %v522, %v523
        %v525 = vrot.slane %v476, 1
        %v526 = vsel %vm521, %v523, %v525
        %v527 = vrot.slane %v459, 1
        %v528 = vrot.slane %v334, 1
        %v529 = vsel %vm521, %v527, %v528
        %v530 = vrot.slane %v475, 1
        %v531 = vsel %vm521, %v528, %v530
        %v532 = vrot.slane %v461, 1
        %v533 = vrot.slane %v340, 1
        %v534 = vsel %vm521, %v532, %v533
        %v535 = vrot.slane %v477, 1
        %v536 = vsel %vm521, %v533, %v535
        %v537 = vrot.slane %v462, 1
        %v538 = vrot.slane %v343, 1
        %v539 = vsel %vm521, %v537, %v538
        %v540 = vrot.slane %v478, 1
        %v541 = vsel %vm521, %v538, %v540
        %v542 = vrot.slane %v463, 1
        %v543 = vrot.slane %v346, 1
        %v544 = vsel %vm521, %v542, %v543
        %v545 = vrot.slane %v479, 1
        %v546 = vsel %vm521, %v543, %v545
        %v547 = vrot.slane %v464, 1
        %v548 = vrot.slane %v349, 1
        %v549 = vsel %vm521, %v547, %v548
        %v550 = vrot.slane %v480, 1
        %v551 = vsel %vm521, %v548, %v550
        %v552 = vrot.slane %v465, 1
        %v553 = vrot.slane %v352, 1
        %v554 = vsel %vm521, %v552, %v553
        %v555 = vrot.slane %v481, 1
        %v556 = vsel %vm521, %v553, %v555
        %v557 = vrot.slane %v466, 1
        %v558 = vrot.slane %v355, 1
        %v559 = vsel %vm521, %v557, %v558
        %v560 = vrot.slane %v482, 1
        %v561 = vsel %vm521, %v558, %v560
        %v562 = vrot.slane %v467, 1
        %v563 = vrot.slane %v358, 1
        %v564 = vsel %vm521, %v562, %v563
        %v565 = vrot.slane %v483, 1
        %v566 = vsel %vm521, %v563, %v565
        %v567 = vrot.slane %v468, 1
        %v568 = vrot.slane %v361, 1
        %v569 = vsel %vm521, %v567, %v568
        %v570 = vrot.slane %v484, 1
        %v571 = vsel %vm521, %v568, %v570
        %v572 = vrot.slane %v469, 1
        %v573 = vrot.slane %v364, 1
        %v574 = vsel %vm521, %v572, %v573
        %v575 = vrot.slane %v485, 1
        %v576 = vsel %vm521, %v573, %v575
        %v577 = vrot.slane %v470, 1
        %v578 = vrot.slane %v367, 1
        %v579 = vsel %vm521, %v577, %v578
        %v580 = vrot.slane %v486, 1
        %v581 = vsel %vm521, %v578, %v580
        %v582 = vrot.slane %v471, 1
        %v583 = vrot.slane %v370, 1
        %v584 = vsel %vm521, %v582, %v583
        %v585 = vrot.slane %v487, 1
        %v586 = vsel %vm521, %v583, %v585
        %v587 = vrot.slane %v472, 1
        %v588 = vrot.slane %v373, 1
        %v589 = vsel %vm521, %v587, %v588
        %v590 = vrot.slane %v488, 1
        %v591 = vsel %vm521, %v588, %v590
        %v592 = vrot.slane %v473, 1
        %v593 = vrot.slane %v376, 1
        %v594 = vsel %vm521, %v592, %v593
        %v595 = vrot.slane %v489, 1
        %v596 = vsel %vm521, %v593, %v595
        %vm597 = vcmask 1045504
        %v598 = vrot.slane %v460, 2
        %v599 = vrot.slane %v337, 2
        %v600 = vsel %vm597, %v598, %v599
        %v601 = vrot.slane %v476, 2
        %v602 = vsel %vm597, %v599, %v601
        %v603 = vrot.slane %v459, 2
        %v604 = vrot.slane %v334, 2
        %v605 = vsel %vm597, %v603, %v604
        %v606 = vrot.slane %v475, 2
        %v607 = vsel %vm597, %v604, %v606
        %v608 = vrot.slane %v461, 2
        %v609 = vrot.slane %v340, 2
        %v610 = vsel %vm597, %v608, %v609
        %v611 = vrot.slane %v477, 2
        %v612 = vsel %vm597, %v609, %v611
        %v613 = vrot.slane %v462, 2
        %v614 = vrot.slane %v343, 2
        %v615 = vsel %vm597, %v613, %v614
        %v616 = vrot.slane %v478, 2
        %v617 = vsel %vm597, %v614, %v616
        %v618 = vrot.slane %v463, 2
        %v619 = vrot.slane %v346, 2
        %v620 = vsel %vm597, %v618, %v619
        %v621 = vrot.slane %v479, 2
        %v622 = vsel %vm597, %v619, %v621
        %v623 = vrot.slane %v464, 2
        %v624 = vrot.slane %v349, 2
        %v625 = vsel %vm597, %v623, %v624
        %v626 = vrot.slane %v480, 2
        %v627 = vsel %vm597, %v624, %v626
        %v628 = vrot.slane %v465, 2
        %v629 = vrot.slane %v352, 2
        %v630 = vsel %vm597, %v628, %v629
        %v631 = vrot.slane %v481, 2
        %v632 = vsel %vm597, %v629, %v631
        %v633 = vrot.slane %v466, 2
        %v634 = vrot.slane %v355, 2
        %v635 = vsel %vm597, %v633, %v634
        %v636 = vrot.slane %v482, 2
        %v637 = vsel %vm597, %v634, %v636
        %v638 = vrot.slane %v467, 2
        %v639 = vrot.slane %v358, 2
        %v640 = vsel %vm597, %v638, %v639
        %v641 = vrot.slane %v483, 2
        %v642 = vsel %vm597, %v639, %v641
        %v643 = vrot.slane %v468, 2
        %v644 = vrot.slane %v361, 2
        %v645 = vsel %vm597, %v643, %v644
        %v646 = vrot.slane %v484, 2
        %v647 = vsel %vm597, %v644, %v646
        %v648 = vrot.slane %v469, 2
        %v649 = vrot.slane %v364, 2
        %v650 = vsel %vm597, %v648, %v649
        %v651 = vrot.slane %v485, 2
        %v652 = vsel %vm597, %v649, %v651
        %v653 = vrot.slane %v470, 2
        %v654 = vrot.slane %v367, 2
        %v655 = vsel %vm597, %v653, %v654
        %v656 = vrot.slane %v486, 2
        %v657 = vsel %vm597, %v654, %v656
        %v658 = vrot.slane %v471, 2
        %v659 = vrot.slane %v370, 2
        %v660 = vsel %vm597, %v658, %v659
        %v661 = vrot.slane %v487, 2
        %v662 = vsel %vm597, %v659, %v661
        %v663 = vrot.slane %v472, 2
        %v664 = vrot.slane %v373, 2
        %v665 = vsel %vm597, %v663, %v664
        %v666 = vrot.slane %v488, 2
        %v667 = vsel %vm597, %v664, %v666
        %v668 = vrot.slane %v473, 2
        %v669 = vrot.slane %v376, 2
        %v670 = vsel %vm597, %v668, %v669
        %v671 = vrot.slane %v489, 2
        %v672 = vsel %vm597, %v669, %v671
        %v675 = vrot.slane %v474, 1
        %v676 = vrot.slane %v379, 1
        %v677 = vsel %vm521, %v675, %v676
        %v678 = vrot.slane %v490, 1
        %v679 = vsel %vm521, %v676, %v678
        %v680 = vrot.slane %v474, 2
        %v681 = vrot.slane %v379, 2
        %v682 = vsel %vm597, %v680, %v681
        %v683 = vrot.slane %v490, 2
        %v684 = vsel %vm597, %v681, %v683
        %685 = vrot.lane.b32.xlu0 %v524, 4
        %v686 = vpop.permute.xlu0 %685
        %687 = vrot.lane.b32.xlu0 %v526, 4
        %v688 = vpop.permute.xlu0 %687
        %689 = vrot.lane.b32.xlu0 %v529, 4
        %v690 = vpop.permute.xlu0 %689
        %691 = vrot.lane.b32.xlu0 %v531, 4
        %v692 = vpop.permute.xlu0 %691
        %693 = vrot.lane.b32.xlu0 %v534, 4
        %v694 = vpop.permute.xlu0 %693
        %695 = vrot.lane.b32.xlu0 %v536, 4
        %v696 = vpop.permute.xlu0 %695
        %697 = vrot.lane.b32.xlu0 %v539, 4
        %v698 = vpop.permute.xlu0 %697
        %699 = vrot.lane.b32.xlu0 %v541, 4
        %v700 = vpop.permute.xlu0 %699
        %701 = vrot.lane.b32.xlu0 %v544, 4
        %v702 = vpop.permute.xlu0 %701
        %703 = vrot.lane.b32.xlu0 %v546, 4
        %v704 = vpop.permute.xlu0 %703
        %705 = vrot.lane.b32.xlu0 %v549, 4
        %v706 = vpop.permute.xlu0 %705
        %707 = vrot.lane.b32.xlu0 %v551, 4
        %v708 = vpop.permute.xlu0 %707
        %709 = vrot.lane.b32.xlu0 %v554, 4
        %v710 = vpop.permute.xlu0 %709
        %711 = vrot.lane.b32.xlu0 %v556, 4
        %v712 = vpop.permute.xlu0 %711
        %713 = vrot.lane.b32.xlu0 %v559, 4
        %v714 = vpop.permute.xlu0 %713
        %715 = vrot.lane.b32.xlu0 %v561, 4
        %v716 = vpop.permute.xlu0 %715
        %717 = vrot.lane.b32.xlu0 %v564, 4
        %v718 = vpop.permute.xlu0 %717
        %719 = vrot.lane.b32.xlu0 %v566, 4
        %v720 = vpop.permute.xlu0 %719
        %721 = vrot.lane.b32.xlu0 %v569, 4
        %v722 = vpop.permute.xlu0 %721
        %723 = vrot.lane.b32.xlu0 %v571, 4
        %v724 = vpop.permute.xlu0 %723
        %725 = vrot.lane.b32.xlu0 %v574, 4
        %v726 = vpop.permute.xlu0 %725
        %727 = vrot.lane.b32.xlu0 %v576, 4
        %v728 = vpop.permute.xlu0 %727
        %729 = vrot.lane.b32.xlu0 %v579, 4
        %v730 = vpop.permute.xlu0 %729
        %731 = vrot.lane.b32.xlu0 %v581, 4
        %v732 = vpop.permute.xlu0 %731
        %733 = vrot.lane.b32.xlu0 %v584, 4
        %v734 = vpop.permute.xlu0 %733
        %735 = vrot.lane.b32.xlu0 %v586, 4
        %v736 = vpop.permute.xlu0 %735
        %737 = vrot.lane.b32.xlu0 %v589, 4
        %v738 = vpop.permute.xlu0 %737
        %739 = vrot.lane.b32.xlu0 %v591, 4
        %v740 = vpop.permute.xlu0 %739
        %741 = vrot.lane.b32.xlu0 %v594, 4
        %v742 = vpop.permute.xlu0 %741
        %743 = vrot.lane.b32.xlu0 %v596, 4
        %v744 = vpop.permute.xlu0 %743
        %775 = vrot.lane.b32.xlu0 %v600, 8
        %v776 = vpop.permute.xlu0 %775
        %777 = vrot.lane.b32.xlu0 %v602, 8
        %v778 = vpop.permute.xlu0 %777
        %779 = vrot.lane.b32.xlu0 %v605, 8
        %v780 = vpop.permute.xlu0 %779
        %781 = vrot.lane.b32.xlu0 %v607, 8
        %v782 = vpop.permute.xlu0 %781
        %783 = vrot.lane.b32.xlu0 %v610, 8
        %v784 = vpop.permute.xlu0 %783
        %785 = vrot.lane.b32.xlu0 %v612, 8
        %v786 = vpop.permute.xlu0 %785
        %787 = vrot.lane.b32.xlu0 %v615, 8
        %v788 = vpop.permute.xlu0 %787
        %789 = vrot.lane.b32.xlu0 %v617, 8
        %v790 = vpop.permute.xlu0 %789
        %791 = vrot.lane.b32.xlu0 %v620, 8
        %v792 = vpop.permute.xlu0 %791
        %793 = vrot.lane.b32.xlu0 %v622, 8
        %v794 = vpop.permute.xlu0 %793
        %795 = vrot.lane.b32.xlu0 %v625, 8
        %v796 = vpop.permute.xlu0 %795
        %797 = vrot.lane.b32.xlu0 %v627, 8
        %v798 = vpop.permute.xlu0 %797
        %799 = vrot.lane.b32.xlu0 %v630, 8
        %v800 = vpop.permute.xlu0 %799
        %801 = vrot.lane.b32.xlu0 %v632, 8
        %v802 = vpop.permute.xlu0 %801
        %803 = vrot.lane.b32.xlu0 %v635, 8
        %v804 = vpop.permute.xlu0 %803
        %805 = vrot.lane.b32.xlu0 %v637, 8
        %v806 = vpop.permute.xlu0 %805
        %807 = vrot.lane.b32.xlu0 %v640, 8
        %v808 = vpop.permute.xlu0 %807
        %809 = vrot.lane.b32.xlu0 %v642, 8
        %v810 = vpop.permute.xlu0 %809
        %811 = vrot.lane.b32.xlu0 %v645, 8
        %v812 = vpop.permute.xlu0 %811
        %813 = vrot.lane.b32.xlu0 %v647, 8
        %v814 = vpop.permute.xlu0 %813
        %815 = vrot.lane.b32.xlu0 %v650, 8
        %v816 = vpop.permute.xlu0 %815
        %817 = vrot.lane.b32.xlu0 %v652, 8
        %v818 = vpop.permute.xlu0 %817
        %819 = vrot.lane.b32.xlu0 %v655, 8
        %v820 = vpop.permute.xlu0 %819
        %821 = vrot.lane.b32.xlu0 %v657, 8
        %v822 = vpop.permute.xlu0 %821
        %823 = vrot.lane.b32.xlu0 %v660, 8
        %v824 = vpop.permute.xlu0 %823
        %825 = vrot.lane.b32.xlu0 %v662, 8
        %v826 = vpop.permute.xlu0 %825
        %827 = vrot.lane.b32.xlu0 %v665, 8
        %v828 = vpop.permute.xlu0 %827
        %829 = vrot.lane.b32.xlu0 %v667, 8
        %v830 = vpop.permute.xlu0 %829
        %831 = vrot.lane.b32.xlu0 %v670, 8
        %v832 = vpop.permute.xlu0 %831
        %833 = vrot.lane.b32.xlu0 %v672, 8
        %v834 = vpop.permute.xlu0 %833
        %865 = vrot.lane.b32.xlu0 %v459, 12
        %v866 = vpop.permute.xlu0 %865
        %867 = vrot.lane.b32.xlu0 %v334, 12
        %v868 = vpop.permute.xlu0 %867
        %869 = vrot.lane.b32.xlu0 %v460, 12
        %v870 = vpop.permute.xlu0 %869
        %871 = vrot.lane.b32.xlu0 %v337, 12
        %v872 = vpop.permute.xlu0 %871
        %873 = vrot.lane.b32.xlu0 %v461, 12
        %v874 = vpop.permute.xlu0 %873
        %875 = vrot.lane.b32.xlu0 %v340, 12
        %v876 = vpop.permute.xlu0 %875
        %877 = vrot.lane.b32.xlu0 %v462, 12
        %v878 = vpop.permute.xlu0 %877
        %879 = vrot.lane.b32.xlu0 %v343, 12
        %v880 = vpop.permute.xlu0 %879
        %881 = vrot.lane.b32.xlu0 %v463, 12
        %v882 = vpop.permute.xlu0 %881
        %883 = vrot.lane.b32.xlu0 %v346, 12
        %v884 = vpop.permute.xlu0 %883
        %885 = vrot.lane.b32.xlu0 %v464, 12
        %v886 = vpop.permute.xlu0 %885
        %887 = vrot.lane.b32.xlu0 %v349, 12
        %v888 = vpop.permute.xlu0 %887
        %889 = vrot.lane.b32.xlu0 %v465, 12
        %v890 = vpop.permute.xlu0 %889
        %891 = vrot.lane.b32.xlu0 %v352, 12
        %v892 = vpop.permute.xlu0 %891
        %893 = vrot.lane.b32.xlu0 %v466, 12
        %v894 = vpop.permute.xlu0 %893
        %895 = vrot.lane.b32.xlu0 %v355, 12
        %v896 = vpop.permute.xlu0 %895
        %897 = vrot.lane.b32.xlu0 %v467, 12
        %v898 = vpop.permute.xlu0 %897
        %899 = vrot.lane.b32.xlu0 %v358, 12
        %v900 = vpop.permute.xlu0 %899
        %901 = vrot.lane.b32.xlu0 %v468, 12
        %v902 = vpop.permute.xlu0 %901
        %903 = vrot.lane.b32.xlu0 %v361, 12
        %v904 = vpop.permute.xlu0 %903
        %905 = vrot.lane.b32.xlu0 %v469, 12
        %v906 = vpop.permute.xlu0 %905
        %907 = vrot.lane.b32.xlu0 %v364, 12
        %v908 = vpop.permute.xlu0 %907
        %909 = vrot.lane.b32.xlu0 %v470, 12
        %v910 = vpop.permute.xlu0 %909
        %911 = vrot.lane.b32.xlu0 %v367, 12
        %v912 = vpop.permute.xlu0 %911
        %913 = vrot.lane.b32.xlu0 %v471, 12
        %v914 = vpop.permute.xlu0 %913
        %915 = vrot.lane.b32.xlu0 %v370, 12
        %v916 = vpop.permute.xlu0 %915
        %917 = vrot.lane.b32.xlu0 %v472, 12
        %v918 = vpop.permute.xlu0 %917
        %919 = vrot.lane.b32.xlu0 %v373, 12
        %v920 = vpop.permute.xlu0 %919
        %921 = vrot.lane.b32.xlu0 %v473, 12
        %v922 = vpop.permute.xlu0 %921
        %923 = vrot.lane.b32.xlu0 %v376, 12
        %v924 = vpop.permute.xlu0 %923
        %925 = vrot.lane.b32.xlu0 %v474, 12
        %v926 = vpop.permute.xlu0 %925
        %927 = vrot.lane.b32.xlu0 %v379, 12
        %v928 = vpop.permute.xlu0 %927
        %961 = vrot.lane.b32.xlu0 %v529, 16
        %v962 = vpop.permute.xlu0 %961
        %963 = vrot.lane.b32.xlu0 %v531, 16
        %v964 = vpop.permute.xlu0 %963
        %965 = vrot.lane.b32.xlu0 %v524, 16
        %v966 = vpop.permute.xlu0 %965
        %967 = vrot.lane.b32.xlu0 %v526, 16
        %v968 = vpop.permute.xlu0 %967
        %969 = vrot.lane.b32.xlu0 %v534, 16
        %v970 = vpop.permute.xlu0 %969
        %971 = vrot.lane.b32.xlu0 %v536, 16
        %v972 = vpop.permute.xlu0 %971
        %973 = vrot.lane.b32.xlu0 %v539, 16
        %v974 = vpop.permute.xlu0 %973
        %975 = vrot.lane.b32.xlu0 %v541, 16
        %v976 = vpop.permute.xlu0 %975
        %977 = vrot.lane.b32.xlu0 %v544, 16
        %v978 = vpop.permute.xlu0 %977
        %979 = vrot.lane.b32.xlu0 %v546, 16
        %v980 = vpop.permute.xlu0 %979
        %981 = vrot.lane.b32.xlu0 %v549, 16
        %v982 = vpop.permute.xlu0 %981
        %983 = vrot.lane.b32.xlu0 %v551, 16
        %v984 = vpop.permute.xlu0 %983
        %985 = vrot.lane.b32.xlu0 %v554, 16
        %v986 = vpop.permute.xlu0 %985
        %987 = vrot.lane.b32.xlu0 %v556, 16
        %v988 = vpop.permute.xlu0 %987
        %989 = vrot.lane.b32.xlu0 %v559, 16
        %v990 = vpop.permute.xlu0 %989
        %991 = vrot.lane.b32.xlu0 %v561, 16
        %v992 = vpop.permute.xlu0 %991
        %993 = vrot.lane.b32.xlu0 %v564, 16
        %v994 = vpop.permute.xlu0 %993
        %995 = vrot.lane.b32.xlu0 %v566, 16
        %v996 = vpop.permute.xlu0 %995
        %997 = vrot.lane.b32.xlu0 %v569, 16
        %v998 = vpop.permute.xlu0 %997
        %999 = vrot.lane.b32.xlu0 %v571, 16
        %v1000 = vpop.permute.xlu0 %999
        %1001 = vrot.lane.b32.xlu0 %v574, 16
        %v1002 = vpop.permute.xlu0 %1001
        %1003 = vrot.lane.b32.xlu0 %v576, 16
        %v1004 = vpop.permute.xlu0 %1003
        %1005 = vrot.lane.b32.xlu0 %v579, 16
        %v1006 = vpop.permute.xlu0 %1005
        %1007 = vrot.lane.b32.xlu0 %v581, 16
        %v1008 = vpop.permute.xlu0 %1007
        %1009 = vrot.lane.b32.xlu0 %v584, 16
        %v1010 = vpop.permute.xlu0 %1009
        %1011 = vrot.lane.b32.xlu0 %v586, 16
        %v1012 = vpop.permute.xlu0 %1011
        %1013 = vrot.lane.b32.xlu0 %v589, 16
        %v1014 = vpop.permute.xlu0 %1013
        %1015 = vrot.lane.b32.xlu0 %v591, 16
        %v1016 = vpop.permute.xlu0 %1015
        %1017 = vrot.lane.b32.xlu0 %v594, 16
        %v1018 = vpop.permute.xlu0 %1017
        %1019 = vrot.lane.b32.xlu0 %v596, 16
        %v1020 = vpop.permute.xlu0 %1019
        %1021 = vrot.lane.b32.xlu0 %v677, 16
        %v1022 = vpop.permute.xlu0 %1021
        %1023 = vrot.lane.b32.xlu0 %v679, 16
        %v1024 = vpop.permute.xlu0 %1023
        %1057 = vrot.lane.b32.xlu0 %v605, 20
        %v1058 = vpop.permute.xlu0 %1057
        %1059 = vrot.lane.b32.xlu0 %v607, 20
        %v1060 = vpop.permute.xlu0 %1059
        %1061 = vrot.lane.b32.xlu0 %v600, 20
        %v1062 = vpop.permute.xlu0 %1061
        %1063 = vrot.lane.b32.xlu0 %v602, 20
        %v1064 = vpop.permute.xlu0 %1063
        %1065 = vrot.lane.b32.xlu0 %v610, 20
        %v1066 = vpop.permute.xlu0 %1065
        %1067 = vrot.lane.b32.xlu0 %v612, 20
        %v1068 = vpop.permute.xlu0 %1067
        %1069 = vrot.lane.b32.xlu0 %v615, 20
        %v1070 = vpop.permute.xlu0 %1069
        %1071 = vrot.lane.b32.xlu0 %v617, 20
        %v1072 = vpop.permute.xlu0 %1071
        %1073 = vrot.lane.b32.xlu0 %v620, 20
        %v1074 = vpop.permute.xlu0 %1073
        %1075 = vrot.lane.b32.xlu0 %v622, 20
        %v1076 = vpop.permute.xlu0 %1075
        %1077 = vrot.lane.b32.xlu0 %v625, 20
        %v1078 = vpop.permute.xlu0 %1077
        %1079 = vrot.lane.b32.xlu0 %v627, 20
        %v1080 = vpop.permute.xlu0 %1079
        %1081 = vrot.lane.b32.xlu0 %v630, 20
        %v1082 = vpop.permute.xlu0 %1081
        %1083 = vrot.lane.b32.xlu0 %v632, 20
        %v1084 = vpop.permute.xlu0 %1083
        %1085 = vrot.lane.b32.xlu0 %v635, 20
        %v1086 = vpop.permute.xlu0 %1085
        %1087 = vrot.lane.b32.xlu0 %v637, 20
        %v1088 = vpop.permute.xlu0 %1087
        %1089 = vrot.lane.b32.xlu0 %v640, 20
        %v1090 = vpop.permute.xlu0 %1089
        %1091 = vrot.lane.b32.xlu0 %v642, 20
        %v1092 = vpop.permute.xlu0 %1091
        %1093 = vrot.lane.b32.xlu0 %v645, 20
        %v1094 = vpop.permute.xlu0 %1093
        %1095 = vrot.lane.b32.xlu0 %v647, 20
        %v1096 = vpop.permute.xlu0 %1095
        %1097 = vrot.lane.b32.xlu0 %v650, 20
        %v1098 = vpop.permute.xlu0 %1097
        %1099 = vrot.lane.b32.xlu0 %v652, 20
        %v1100 = vpop.permute.xlu0 %1099
        %1101 = vrot.lane.b32.xlu0 %v655, 20
        %v1102 = vpop.permute.xlu0 %1101
        %1103 = vrot.lane.b32.xlu0 %v657, 20
        %v1104 = vpop.permute.xlu0 %1103
        %1105 = vrot.lane.b32.xlu0 %v660, 20
        %v1106 = vpop.permute.xlu0 %1105
        %1107 = vrot.lane.b32.xlu0 %v662, 20
        %v1108 = vpop.permute.xlu0 %1107
        %1109 = vrot.lane.b32.xlu0 %v665, 20
        %v1110 = vpop.permute.xlu0 %1109
        %1111 = vrot.lane.b32.xlu0 %v667, 20
        %v1112 = vpop.permute.xlu0 %1111
        %1113 = vrot.lane.b32.xlu0 %v670, 20
        %v1114 = vpop.permute.xlu0 %1113
        %1115 = vrot.lane.b32.xlu0 %v672, 20
        %v1116 = vpop.permute.xlu0 %1115
        %1117 = vrot.lane.b32.xlu0 %v682, 20
        %v1118 = vpop.permute.xlu0 %1117
        %1119 = vrot.lane.b32.xlu0 %v684, 20
        %v1120 = vpop.permute.xlu0 %1119
        %1153 = vrot.lane.b32.xlu0 %v460, 24
        %v1154 = vpop.permute.xlu0 %1153
        %1155 = vrot.lane.b32.xlu0 %v337, 24
        %v1156 = vpop.permute.xlu0 %1155
        %1157 = vrot.lane.b32.xlu0 %v461, 24
        %v1158 = vpop.permute.xlu0 %1157
        %1159 = vrot.lane.b32.xlu0 %v340, 24
        %v1160 = vpop.permute.xlu0 %1159
        %1161 = vrot.lane.b32.xlu0 %v462, 24
        %v1162 = vpop.permute.xlu0 %1161
        %1163 = vrot.lane.b32.xlu0 %v343, 24
        %v1164 = vpop.permute.xlu0 %1163
        %1165 = vrot.lane.b32.xlu0 %v463, 24
        %v1166 = vpop.permute.xlu0 %1165
        %1167 = vrot.lane.b32.xlu0 %v346, 24
        %v1168 = vpop.permute.xlu0 %1167
        %1169 = vrot.lane.b32.xlu0 %v464, 24
        %v1170 = vpop.permute.xlu0 %1169
        %1171 = vrot.lane.b32.xlu0 %v349, 24
        %v1172 = vpop.permute.xlu0 %1171
        %1173 = vrot.lane.b32.xlu0 %v465, 24
        %v1174 = vpop.permute.xlu0 %1173
        %1175 = vrot.lane.b32.xlu0 %v352, 24
        %v1176 = vpop.permute.xlu0 %1175
        %1177 = vrot.lane.b32.xlu0 %v466, 24
        %v1178 = vpop.permute.xlu0 %1177
        %1179 = vrot.lane.b32.xlu0 %v355, 24
        %v1180 = vpop.permute.xlu0 %1179
        %1181 = vrot.lane.b32.xlu0 %v467, 24
        %v1182 = vpop.permute.xlu0 %1181
        %1183 = vrot.lane.b32.xlu0 %v358, 24
        %v1184 = vpop.permute.xlu0 %1183
        %1185 = vrot.lane.b32.xlu0 %v468, 24
        %v1186 = vpop.permute.xlu0 %1185
        %1187 = vrot.lane.b32.xlu0 %v361, 24
        %v1188 = vpop.permute.xlu0 %1187
        %1189 = vrot.lane.b32.xlu0 %v469, 24
        %v1190 = vpop.permute.xlu0 %1189
        %1191 = vrot.lane.b32.xlu0 %v364, 24
        %v1192 = vpop.permute.xlu0 %1191
        %1193 = vrot.lane.b32.xlu0 %v470, 24
        %v1194 = vpop.permute.xlu0 %1193
        %1195 = vrot.lane.b32.xlu0 %v367, 24
        %v1196 = vpop.permute.xlu0 %1195
        %1197 = vrot.lane.b32.xlu0 %v471, 24
        %v1198 = vpop.permute.xlu0 %1197
        %1199 = vrot.lane.b32.xlu0 %v370, 24
        %v1200 = vpop.permute.xlu0 %1199
        %1201 = vrot.lane.b32.xlu0 %v472, 24
        %v1202 = vpop.permute.xlu0 %1201
        %1203 = vrot.lane.b32.xlu0 %v373, 24
        %v1204 = vpop.permute.xlu0 %1203
        %1205 = vrot.lane.b32.xlu0 %v473, 24
        %v1206 = vpop.permute.xlu0 %1205
        %1207 = vrot.lane.b32.xlu0 %v376, 24
        %v1208 = vpop.permute.xlu0 %1207
        %1209 = vrot.lane.b32.xlu0 %v474, 24
        %v1210 = vpop.permute.xlu0 %1209
        %1211 = vrot.lane.b32.xlu0 %v379, 24
        %v1212 = vpop.permute.xlu0 %1211
        %1243 = vrot.lane.b32.xlu0 %v524, 28
        %v1244 = vpop.permute.xlu0 %1243
        %1245 = vrot.lane.b32.xlu0 %v526, 28
        %v1246 = vpop.permute.xlu0 %1245
        %1247 = vrot.lane.b32.xlu0 %v534, 28
        %v1248 = vpop.permute.xlu0 %1247
        %1249 = vrot.lane.b32.xlu0 %v536, 28
        %v1250 = vpop.permute.xlu0 %1249
        %1251 = vrot.lane.b32.xlu0 %v539, 28
        %v1252 = vpop.permute.xlu0 %1251
        %1253 = vrot.lane.b32.xlu0 %v541, 28
        %v1254 = vpop.permute.xlu0 %1253
        %1255 = vrot.lane.b32.xlu0 %v544, 28
        %v1256 = vpop.permute.xlu0 %1255
        %1257 = vrot.lane.b32.xlu0 %v546, 28
        %v1258 = vpop.permute.xlu0 %1257
        %1259 = vrot.lane.b32.xlu0 %v549, 28
        %v1260 = vpop.permute.xlu0 %1259
        %1261 = vrot.lane.b32.xlu0 %v551, 28
        %v1262 = vpop.permute.xlu0 %1261
        %1263 = vrot.lane.b32.xlu0 %v554, 28
        %v1264 = vpop.permute.xlu0 %1263
        %1265 = vrot.lane.b32.xlu0 %v556, 28
        %v1266 = vpop.permute.xlu0 %1265
        %1267 = vrot.lane.b32.xlu0 %v559, 28
        %v1268 = vpop.permute.xlu0 %1267
        %1269 = vrot.lane.b32.xlu0 %v561, 28
        %v1270 = vpop.permute.xlu0 %1269
        %1271 = vrot.lane.b32.xlu0 %v564, 28
        %v1272 = vpop.permute.xlu0 %1271
        %1273 = vrot.lane.b32.xlu0 %v566, 28
        %v1274 = vpop.permute.xlu0 %1273
        %1275 = vrot.lane.b32.xlu0 %v569, 28
        %v1276 = vpop.permute.xlu0 %1275
        %1277 = vrot.lane.b32.xlu0 %v571, 28
        %v1278 = vpop.permute.xlu0 %1277
        %1279 = vrot.lane.b32.xlu0 %v574, 28
        %v1280 = vpop.permute.xlu0 %1279
        %1281 = vrot.lane.b32.xlu0 %v576, 28
        %v1282 = vpop.permute.xlu0 %1281
        %1283 = vrot.lane.b32.xlu0 %v579, 28
        %v1284 = vpop.permute.xlu0 %1283
        %1285 = vrot.lane.b32.xlu0 %v581, 28
        %v1286 = vpop.permute.xlu0 %1285
        %1287 = vrot.lane.b32.xlu0 %v584, 28
        %v1288 = vpop.permute.xlu0 %1287
        %1289 = vrot.lane.b32.xlu0 %v586, 28
        %v1290 = vpop.permute.xlu0 %1289
        %1291 = vrot.lane.b32.xlu0 %v589, 28
        %v1292 = vpop.permute.xlu0 %1291
        %1293 = vrot.lane.b32.xlu0 %v591, 28
        %v1294 = vpop.permute.xlu0 %1293
        %1295 = vrot.lane.b32.xlu0 %v594, 28
        %v1296 = vpop.permute.xlu0 %1295
        %1297 = vrot.lane.b32.xlu0 %v596, 28
        %v1298 = vpop.permute.xlu0 %1297
        %1299 = vrot.lane.b32.xlu0 %v677, 28
        %v1300 = vpop.permute.xlu0 %1299
        %1301 = vrot.lane.b32.xlu0 %v679, 28
        %v1302 = vpop.permute.xlu0 %1301
        %1333 = vrot.lane.b32.xlu0 %v600, 32
        %v1334 = vpop.permute.xlu0 %1333
        %1335 = vrot.lane.b32.xlu0 %v602, 32
        %v1336 = vpop.permute.xlu0 %1335
        %1337 = vrot.lane.b32.xlu0 %v610, 32
        %v1338 = vpop.permute.xlu0 %1337
        %1339 = vrot.lane.b32.xlu0 %v612, 32
        %v1340 = vpop.permute.xlu0 %1339
        %1341 = vrot.lane.b32.xlu0 %v615, 32
        %v1342 = vpop.permute.xlu0 %1341
        %1343 = vrot.lane.b32.xlu0 %v617, 32
        %v1344 = vpop.permute.xlu0 %1343
        %1345 = vrot.lane.b32.xlu0 %v620, 32
        %v1346 = vpop.permute.xlu0 %1345
        %1347 = vrot.lane.b32.xlu0 %v622, 32
        %v1348 = vpop.permute.xlu0 %1347
        %1349 = vrot.lane.b32.xlu0 %v625, 32
        %v1350 = vpop.permute.xlu0 %1349
        %1351 = vrot.lane.b32.xlu0 %v627, 32
        %v1352 = vpop.permute.xlu0 %1351
        %1353 = vrot.lane.b32.xlu0 %v630, 32
        %v1354 = vpop.permute.xlu0 %1353
        %1355 = vrot.lane.b32.xlu0 %v632, 32
        %v1356 = vpop.permute.xlu0 %1355
        %1357 = vrot.lane.b32.xlu0 %v635, 32
        %v1358 = vpop.permute.xlu0 %1357
        %1359 = vrot.lane.b32.xlu0 %v637, 32
        %v1360 = vpop.permute.xlu0 %1359
        %1361 = vrot.lane.b32.xlu0 %v640, 32
        %v1362 = vpop.permute.xlu0 %1361
        %1363 = vrot.lane.b32.xlu0 %v642, 32
        %v1364 = vpop.permute.xlu0 %1363
        %1365 = vrot.lane.b32.xlu0 %v645, 32
        %v1366 = vpop.permute.xlu0 %1365
        %1367 = vrot.lane.b32.xlu0 %v647, 32
        %v1368 = vpop.permute.xlu0 %1367
        %1369 = vrot.lane.b32.xlu0 %v650, 32
        %v1370 = vpop.permute.xlu0 %1369
        %1371 = vrot.lane.b32.xlu0 %v652, 32
        %v1372 = vpop.permute.xlu0 %1371
        %1373 = vrot.lane.b32.xlu0 %v655, 32
        %v1374 = vpop.permute.xlu0 %1373
        %1375 = vrot.lane.b32.xlu0 %v657, 32
        %v1376 = vpop.permute.xlu0 %1375
        %1377 = vrot.lane.b32.xlu0 %v660, 32
        %v1378 = vpop.permute.xlu0 %1377
        %1379 = vrot.lane.b32.xlu0 %v662, 32
        %v1380 = vpop.permute.xlu0 %1379
        %1381 = vrot.lane.b32.xlu0 %v665, 32
        %v1382 = vpop.permute.xlu0 %1381
        %1383 = vrot.lane.b32.xlu0 %v667, 32
        %v1384 = vpop.permute.xlu0 %1383
        %1385 = vrot.lane.b32.xlu0 %v670, 32
        %v1386 = vpop.permute.xlu0 %1385
        %1387 = vrot.lane.b32.xlu0 %v672, 32
        %v1388 = vpop.permute.xlu0 %1387
        %1389 = vrot.lane.b32.xlu0 %v682, 32
        %v1390 = vpop.permute.xlu0 %1389
        %1391 = vrot.lane.b32.xlu0 %v684, 32
        %v1392 = vpop.permute.xlu0 %1391
        %vm1423 = vcmask 31744
        %v1424 = vsel %vm1423, %v460, %v686
        %v1425 = vsel %vm1423, %v337, %v688
        %v1426 = vsel %vm1423, %v459, %v690
        %v1427 = vsel %vm1423, %v334, %v692
        %v1428 = vsel %vm1423, %v461, %v694
        %v1429 = vsel %vm1423, %v340, %v696
        %v1430 = vsel %vm1423, %v462, %v698
        %v1431 = vsel %vm1423, %v343, %v700
        %v1432 = vsel %vm1423, %v463, %v702
        %v1433 = vsel %vm1423, %v346, %v704
        %v1434 = vsel %vm1423, %v464, %v706
        %v1435 = vsel %vm1423, %v349, %v708
        %v1436 = vsel %vm1423, %v465, %v710
        %v1437 = vsel %vm1423, %v352, %v712
        %v1438 = vsel %vm1423, %v466, %v714
        %v1439 = vsel %vm1423, %v355, %v716
        %v1440 = vsel %vm1423, %v467, %v718
        %v1441 = vsel %vm1423, %v358, %v720
        %v1442 = vsel %vm1423, %v468, %v722
        %v1443 = vsel %vm1423, %v361, %v724
        %v1444 = vsel %vm1423, %v469, %v726
        %v1445 = vsel %vm1423, %v364, %v728
        %v1446 = vsel %vm1423, %v470, %v730
        %v1447 = vsel %vm1423, %v367, %v732
        %v1448 = vsel %vm1423, %v471, %v734
        %v1449 = vsel %vm1423, %v370, %v736
        %v1450 = vsel %vm1423, %v472, %v738
        %v1451 = vsel %vm1423, %v373, %v740
        %v1452 = vsel %vm1423, %v473, %v742
        %v1453 = vsel %vm1423, %v376, %v744
        %vm1454 = vcmask 64512
        %v1455 = vsel %vm1454, %v1424, %v776
        %v1456 = vsel %vm1454, %v1425, %v778
        %v1457 = vsel %vm1454, %v1426, %v780
        %v1458 = vsel %vm1454, %v1427, %v782
        %v1459 = vsel %vm1454, %v1428, %v784
        %v1460 = vsel %vm1454, %v1429, %v786
        %v1461 = vsel %vm1454, %v1430, %v788
        %v1462 = vsel %vm1454, %v1431, %v790
        %v1463 = vsel %vm1454, %v1432, %v792
        %v1464 = vsel %vm1454, %v1433, %v794
        %v1465 = vsel %vm1454, %v1434, %v796
        %v1466 = vsel %vm1454, %v1435, %v798
        %v1467 = vsel %vm1454, %v1436, %v800
        %v1468 = vsel %vm1454, %v1437, %v802
        %v1469 = vsel %vm1454, %v1438, %v804
        %v1470 = vsel %vm1454, %v1439, %v806
        %v1471 = vsel %vm1454, %v1440, %v808
        %v1472 = vsel %vm1454, %v1441, %v810
        %v1473 = vsel %vm1454, %v1442, %v812
        %v1474 = vsel %vm1454, %v1443, %v814
        %v1475 = vsel %vm1454, %v1444, %v816
        %v1476 = vsel %vm1454, %v1445, %v818
        %v1477 = vsel %vm1454, %v1446, %v820
        %v1478 = vsel %vm1454, %v1447, %v822
        %v1479 = vsel %vm1454, %v1448, %v824
        %v1480 = vsel %vm1454, %v1449, %v826
        %v1481 = vsel %vm1454, %v1450, %v828
        %v1482 = vsel %vm1454, %v1451, %v830
        %v1483 = vsel %vm1454, %v1452, %v832
        %v1484 = vsel %vm1454, %v1453, %v834
        %vm1485 = vcmask 97280
        %v1486 = vsel %vm1485, %v1455, %v866
        %v1487 = vsel %vm1485, %v1456, %v868
        %v1488 = vsel %vm1485, %v1457, %v870
        %v1489 = vsel %vm1485, %v1458, %v872
        %v1490 = vsel %vm1485, %v1455, %v874
        %v1491 = vsel %vm1485, %v1456, %v876
        %v1492 = vsel %vm1485, %v1459, %v878
        %v1493 = vsel %vm1485, %v1460, %v880
        %v1494 = vsel %vm1485, %v1461, %v882
        %v1495 = vsel %vm1485, %v1462, %v884
        %v1496 = vsel %vm1485, %v1463, %v886
        %v1497 = vsel %vm1485, %v1464, %v888
        %v1498 = vsel %vm1485, %v1465, %v890
        %v1499 = vsel %vm1485, %v1466, %v892
        %v1500 = vsel %vm1485, %v1467, %v894
        %v1501 = vsel %vm1485, %v1468, %v896
        %v1502 = vsel %vm1485, %v1469, %v898
        %v1503 = vsel %vm1485, %v1470, %v900
        %v1504 = vsel %vm1485, %v1471, %v902
        %v1505 = vsel %vm1485, %v1472, %v904
        %v1506 = vsel %vm1485, %v1473, %v906
        %v1507 = vsel %vm1485, %v1474, %v908
        %v1508 = vsel %vm1485, %v1475, %v910
        %v1509 = vsel %vm1485, %v1476, %v912
        %v1510 = vsel %vm1485, %v1477, %v914
        %v1511 = vsel %vm1485, %v1478, %v916
        %v1512 = vsel %vm1485, %v1479, %v918
        %v1513 = vsel %vm1485, %v1480, %v920
        %v1514 = vsel %vm1485, %v1481, %v922
        %v1515 = vsel %vm1485, %v1482, %v924
        %v1516 = vsel %vm1485, %v1483, %v926
        %v1517 = vsel %vm1485, %v1484, %v928
        %vm1518 = vcmask 130048
        %v1519 = vsel %vm1518, %v1486, %v962
        %v1520 = vsel %vm1518, %v1487, %v964
        %v1521 = vsel %vm1518, %v1488, %v966
        %v1522 = vsel %vm1518, %v1489, %v968
        %v1523 = vsel %vm1518, %v1490, %v970
        %v1524 = vsel %vm1518, %v1491, %v972
        %v1525 = vsel %vm1518, %v1492, %v974
        %v1526 = vsel %vm1518, %v1493, %v976
        %v1527 = vsel %vm1518, %v1494, %v978
        %v1528 = vsel %vm1518, %v1495, %v980
        %v1529 = vsel %vm1518, %v1496, %v982
        %v1530 = vsel %vm1518, %v1497, %v984
        %v1531 = vsel %vm1518, %v1498, %v986
        %v1532 = vsel %vm1518, %v1499, %v988
        %v1533 = vsel %vm1518, %v1500, %v990
        %v1534 = vsel %vm1518, %v1501, %v992
        %v1535 = vsel %vm1518, %v1502, %v994
        %v1536 = vsel %vm1518, %v1503, %v996
        %v1537 = vsel %vm1518, %v1504, %v998
        %v1538 = vsel %vm1518, %v1505, %v1000
        %v1539 = vsel %vm1518, %v1506, %v1002
        %v1540 = vsel %vm1518, %v1507, %v1004
        %v1541 = vsel %vm1518, %v1508, %v1006
        %v1542 = vsel %vm1518, %v1509, %v1008
        %v1543 = vsel %vm1518, %v1510, %v1010
        %v1544 = vsel %vm1518, %v1511, %v1012
        %v1545 = vsel %vm1518, %v1512, %v1014
        %v1546 = vsel %vm1518, %v1513, %v1016
        %v1547 = vsel %vm1518, %v1514, %v1018
        %v1548 = vsel %vm1518, %v1515, %v1020
        %v1549 = vsel %vm1518, %v1516, %v1022
        %v1550 = vsel %vm1518, %v1517, %v1024
        %vm1551 = vcmask 162816
        %v1552 = vsel %vm1551, %v1519, %v1058
        %v1553 = vsel %vm1551, %v1520, %v1060
        %v1554 = vsel %vm1551, %v1521, %v1062
        %v1555 = vsel %vm1551, %v1522, %v1064
        %v1556 = vsel %vm1551, %v1523, %v1066
        %v1557 = vsel %vm1551, %v1524, %v1068
        %v1558 = vsel %vm1551, %v1525, %v1070
        %v1559 = vsel %vm1551, %v1526, %v1072
        %v1560 = vsel %vm1551, %v1527, %v1074
        %v1561 = vsel %vm1551, %v1528, %v1076
        %v1562 = vsel %vm1551, %v1529, %v1078
        %v1563 = vsel %vm1551, %v1530, %v1080
        %v1564 = vsel %vm1551, %v1531, %v1082
        %v1565 = vsel %vm1551, %v1532, %v1084
        %v1566 = vsel %vm1551, %v1533, %v1086
        %v1567 = vsel %vm1551, %v1534, %v1088
        %v1568 = vsel %vm1551, %v1535, %v1090
        %v1569 = vsel %vm1551, %v1536, %v1092
        %v1570 = vsel %vm1551, %v1537, %v1094
        %v1571 = vsel %vm1551, %v1538, %v1096
        %v1572 = vsel %vm1551, %v1539, %v1098
        %v1573 = vsel %vm1551, %v1540, %v1100
        %v1574 = vsel %vm1551, %v1541, %v1102
        %v1575 = vsel %vm1551, %v1542, %v1104
        %v1576 = vsel %vm1551, %v1543, %v1106
        %v1577 = vsel %vm1551, %v1544, %v1108
        %v1578 = vsel %vm1551, %v1545, %v1110
        %v1579 = vsel %vm1551, %v1546, %v1112
        %v1580 = vsel %vm1551, %v1547, %v1114
        %v1581 = vsel %vm1551, %v1548, %v1116
        %v1582 = vsel %vm1551, %v1549, %v1118
        %v1583 = vsel %vm1551, %v1550, %v1120
        %vm1584 = vcmask 195584
        %v1585 = vsel %vm1584, %v1552, %v1154
        %v1586 = vsel %vm1584, %v1553, %v1156
        %v1587 = vsel %vm1584, %v1554, %v1158
        %v1588 = vsel %vm1584, %v1555, %v1160
        %v1589 = vsel %vm1584, %v1556, %v1162
        %v1590 = vsel %vm1584, %v1557, %v1164
        %v1591 = vsel %vm1584, %v1558, %v1166
        %v1592 = vsel %vm1584, %v1559, %v1168
        %v1593 = vsel %vm1584, %v1560, %v1170
        %v1594 = vsel %vm1584, %v1561, %v1172
        %v1595 = vsel %vm1584, %v1562, %v1174
        %v1596 = vsel %vm1584, %v1563, %v1176
        %v1597 = vsel %vm1584, %v1564, %v1178
        %v1598 = vsel %vm1584, %v1565, %v1180
        %v1599 = vsel %vm1584, %v1566, %v1182
        %v1600 = vsel %vm1584, %v1567, %v1184
        %v1601 = vsel %vm1584, %v1568, %v1186
        %v1602 = vsel %vm1584, %v1569, %v1188
        %v1603 = vsel %vm1584, %v1570, %v1190
        %v1604 = vsel %vm1584, %v1571, %v1192
        %v1605 = vsel %vm1584, %v1572, %v1194
        %v1606 = vsel %vm1584, %v1573, %v1196
        %v1607 = vsel %vm1584, %v1574, %v1198
        %v1608 = vsel %vm1584, %v1575, %v1200
        %v1609 = vsel %vm1584, %v1576, %v1202
        %v1610 = vsel %vm1584, %v1577, %v1204
        %v1611 = vsel %vm1584, %v1578, %v1206
        %v1612 = vsel %vm1584, %v1579, %v1208
        %v1613 = vsel %vm1584, %v1580, %v1210
        %v1614 = vsel %vm1584, %v1581, %v1212
        %v1615 = vsel %vm1584, %v1582, %v1206
        %v1616 = vsel %vm1584, %v1583, %v1208
        %vm1617 = vcmask 228352
        %v1618 = vsel %vm1617, %v1585, %v1244
        %v1619 = vsel %vm1617, %v1586, %v1246
        %v1620 = vsel %vm1617, %v1587, %v1248
        %v1621 = vsel %vm1617, %v1588, %v1250
        %v1622 = vsel %vm1617, %v1589, %v1252
        %v1623 = vsel %vm1617, %v1590, %v1254
        %v1624 = vsel %vm1617, %v1591, %v1256
        %v1625 = vsel %vm1617, %v1592, %v1258
        %v1626 = vsel %vm1617, %v1593, %v1260
        %v1627 = vsel %vm1617, %v1594, %v1262
        %v1628 = vsel %vm1617, %v1595, %v1264
        %v1629 = vsel %vm1617, %v1596, %v1266
        %v1630 = vsel %vm1617, %v1597, %v1268
        %v1631 = vsel %vm1617, %v1598, %v1270
        %v1632 = vsel %vm1617, %v1599, %v1272
        %v1633 = vsel %vm1617, %v1600, %v1274
        %v1634 = vsel %vm1617, %v1601, %v1276
        %v1635 = vsel %vm1617, %v1602, %v1278
        %v1636 = vsel %vm1617, %v1603, %v1280
        %v1637 = vsel %vm1617, %v1604, %v1282
        %v1638 = vsel %vm1617, %v1605, %v1284
        %v1639 = vsel %vm1617, %v1606, %v1286
        %v1640 = vsel %vm1617, %v1607, %v1288
        %v1641 = vsel %vm1617, %v1608, %v1290
        %v1642 = vsel %vm1617, %v1609, %v1292
        %v1643 = vsel %vm1617, %v1610, %v1294
        %v1644 = vsel %vm1617, %v1611, %v1296
        %v1645 = vsel %vm1617, %v1612, %v1298
        %v1646 = vsel %vm1617, %v1613, %v1300
        %v1647 = vsel %vm1617, %v1614, %v1302
        %v1648 = vsel %vm1617, %v1615, %v1296
        %v1649 = vsel %vm1617, %v1616, %v1298
        %vm1650 = vcmask 261120
        %v1651 = vsel %vm1650, %v1618, %v1334
        %v1652 = vsel %vm1650, %v1619, %v1336
        %v1653 = vsel %vm1650, %v1620, %v1338
        %v1654 = vsel %vm1650, %v1621, %v1340
        %v1655 = vsel %vm1650, %v1622, %v1342
        %v1656 = vsel %vm1650, %v1623, %v1344
        %v1657 = vsel %vm1650, %v1624, %v1346
        %v1658 = vsel %vm1650, %v1625, %v1348
        %v1659 = vsel %vm1650, %v1626, %v1350
        %v1660 = vsel %vm1650, %v1627, %v1352
        %v1661 = vsel %vm1650, %v1628, %v1354
        %v1662 = vsel %vm1650, %v1629, %v1356
        %v1663 = vsel %vm1650, %v1630, %v1358
        %v1664 = vsel %vm1650, %v1631, %v1360
        %v1665 = vsel %vm1650, %v1632, %v1362
        %v1666 = vsel %vm1650, %v1633, %v1364
        %v1667 = vsel %vm1650, %v1634, %v1366
        %v1668 = vsel %vm1650, %v1635, %v1368
        %v1669 = vsel %vm1650, %v1636, %v1370
        %v1670 = vsel %vm1650, %v1637, %v1372
        %v1671 = vsel %vm1650, %v1638, %v1374
        %v1672 = vsel %vm1650, %v1639, %v1376
        %v1673 = vsel %vm1650, %v1640, %v1378
        %v1674 = vsel %vm1650, %v1641, %v1380
        %v1675 = vsel %vm1650, %v1642, %v1382
        %v1676 = vsel %vm1650, %v1643, %v1384
        %v1677 = vsel %vm1650, %v1644, %v1386
        %v1678 = vsel %vm1650, %v1645, %v1388
        %v1679 = vsel %vm1650, %v1646, %v1390
        %v1680 = vsel %vm1650, %v1647, %v1392
        %v1681 = vsel %vm1650, %v1648, %v1386
        %v1682 = vsel %vm1650, %v1649, %v1388
        %v1684 = vperm.slane %v228, 0
        %vm1686 = vcmask 293888
        %v1688 = vsel %vm1686, %v1651, 0
        %v1691 = vsel %vm1686, %v1652, 0
        %v1694 = vsel %vm1686, %v1653, 0
        %v1697 = vsel %vm1686, %v1654, 0
        %v1700 = vsel %vm1686, %v1655, 0
        %v1703 = vsel %vm1686, %v1656, 0
        %v1706 = vsel %vm1686, %v1657, 0
        %v1709 = vsel %vm1686, %v1658, 0
        %v1712 = vsel %vm1686, %v1659, 0
        %v1715 = vsel %vm1686, %v1660, 0
        %v1718 = vsel %vm1686, %v1661, 0
        %v1721 = vsel %vm1686, %v1662, 0
        %v1724 = vsel %vm1686, %v1663, 0
        %v1727 = vsel %vm1686, %v1664, 0
        %v1730 = vsel %vm1686, %v1665, 0
        %v1733 = vsel %vm1686, %v1666, 0
        %v1736 = vsel %vm1686, %v1667, 0
        %v1739 = vsel %vm1686, %v1668, 0
        %v1742 = vsel %vm1686, %v1669, 0
        %v1745 = vsel %vm1686, %v1670, 0
        %v1748 = vsel %vm1686, %v1671, 0
        %v1751 = vsel %vm1686, %v1672, 0
        %v1754 = vsel %vm1686, %v1673, 0
        %v1757 = vsel %vm1686, %v1674, 0
        %v1760 = vsel %vm1686, %v1675, 0
        %v1763 = vsel %vm1686, %v1676, 0
        %v1766 = vsel %vm1686, %v1677, 0
        %v1769 = vsel %vm1686, %v1678, 0
        %v1772 = vsel %vm1686, %v1679, 0
        %v1775 = vsel %vm1686, %v1680, 0
        %v1778 = vsel %vm1686, %v1681, 0
        %v1781 = vsel %vm1686, %v1682, 0
        %vm1783 = vcmask 1043456
        %v1785 = vsel %vm1783, %v227, 0
        %1787 = vmatpush.msra.mxu0 0.0
        %1788 = vmatpush.msra.mxu0 0.0
        %1789 = vmatpush.msra.mxu0 0.0
        %1790 = vmatpush.msra.mxu0 0.0
        %1791 = vmatpush.msra.mxu0 0.0
        %1792 = vmatpush.msra.mxu0 0.0
        %1793 = vmatpush.msra.mxu0 0.0
        %1794 = vmatpush.msra.mxu0 0.0
        %1795 = vmatpush.msra.mxu0 0.0
        %1796 = vmatpush.msra.mxu0 0.0
        %1797 = vmatpush.msra.mxu0 0.0
        %1798 = vmatpush.msra.mxu0 %v1785
        %1799 = vmatpush.msra.mxu0 %v226
        %1800 = vmatpush.msra.mxu0 %v225
        %1801 = vmatpush.msra.mxu0 %v224
        %1802 = vmatpush.msra.mxu0 %v223
        %1803 = vmatmul.f32.gmra.mxu0 %v1688
        %v1804 = vpop.f32.mrf.mxu0
        %v1805 = vadd.f32 %v1684, %v1804
        %1806 = vmatmul.f32.gmra.mxu0 %v1691
        %v1807 = vpop.f32.mrf.mxu0
        %v1808 = vadd.f32 %v1684, %v1807
        %1809 = vmatmul.f32.gmra.mxu0 %v1694
        %v1810 = vpop.f32.mrf.mxu0
        %v1811 = vadd.f32 %v1684, %v1810
        %1812 = vmatmul.f32.gmra.mxu0 %v1697
        %v1813 = vpop.f32.mrf.mxu0
        %v1814 = vadd.f32 %v1684, %v1813
        %1815 = vmatmul.f32.gmra.mxu0 %v1700
        %v1816 = vpop.f32.mrf.mxu0
        %v1817 = vadd.f32 %v1684, %v1816
        %1818 = vmatmul.f32.gmra.mxu0 %v1703
        %v1819 = vpop.f32.mrf.mxu0
        %v1820 = vadd.f32 %v1684, %v1819
        %1821 = vmatmul.f32.gmra.mxu0 %v1706
        %v1822 = vpop.f32.mrf.mxu0
        %v1823 = vadd.f32 %v1684, %v1822
        %1824 = vmatmul.f32.gmra.mxu0 %v1709
        %v1825 = vpop.f32.mrf.mxu0
        %v1826 = vadd.f32 %v1684, %v1825
        %1827 = vmatmul.f32.gmra.mxu0 %v1712
        %v1828 = vpop.f32.mrf.mxu0
        %v1829 = vadd.f32 %v1684, %v1828
        %1830 = vmatmul.f32.gmra.mxu0 %v1715
        %v1831 = vpop.f32.mrf.mxu0
        %v1832 = vadd.f32 %v1684, %v1831
        %1833 = vmatmul.f32.gmra.mxu0 %v1718
        %v1834 = vpop.f32.mrf.mxu0
        %v1835 = vadd.f32 %v1684, %v1834
        %1836 = vmatmul.f32.gmra.mxu0 %v1721
        %v1837 = vpop.f32.mrf.mxu0
        %v1838 = vadd.f32 %v1684, %v1837
        %1839 = vmatmul.f32.gmra.mxu0 %v1724
        %v1840 = vpop.f32.mrf.mxu0
        %v1841 = vadd.f32 %v1684, %v1840
        %1842 = vmatmul.f32.gmra.mxu0 %v1727
        %v1843 = vpop.f32.mrf.mxu0
        %v1844 = vadd.f32 %v1684, %v1843
        %1845 = vmatmul.f32.gmra.mxu0 %v1730
        %v1846 = vpop.f32.mrf.mxu0
        %v1847 = vadd.f32 %v1684, %v1846
        %1848 = vmatmul.f32.gmra.mxu0 %v1733
        %v1849 = vpop.f32.mrf.mxu0
        %v1850 = vadd.f32 %v1684, %v1849
        %1851 = vmatmul.f32.gmra.mxu0 %v1736
        %v1852 = vpop.f32.mrf.mxu0
        %v1853 = vadd.f32 %v1684, %v1852
        %1854 = vmatmul.f32.gmra.mxu0 %v1739
        %v1855 = vpop.f32.mrf.mxu0
        %v1856 = vadd.f32 %v1684, %v1855
        %1857 = vmatmul.f32.gmra.mxu0 %v1742
        %v1858 = vpop.f32.mrf.mxu0
        %v1859 = vadd.f32 %v1684, %v1858
        %1860 = vmatmul.f32.gmra.mxu0 %v1745
        %v1861 = vpop.f32.mrf.mxu0
        %v1862 = vadd.f32 %v1684, %v1861
        %1863 = vmatmul.f32.gmra.mxu0 %v1748
        %v1864 = vpop.f32.mrf.mxu0
        %v1865 = vadd.f32 %v1684, %v1864
        %1866 = vmatmul.f32.gmra.mxu0 %v1751
        %v1867 = vpop.f32.mrf.mxu0
        %v1868 = vadd.f32 %v1684, %v1867
        %1869 = vmatmul.f32.gmra.mxu0 %v1754
        %v1870 = vpop.f32.mrf.mxu0
        %v1871 = vadd.f32 %v1684, %v1870
        %1872 = vmatmul.f32.gmra.mxu0 %v1757
        %v1873 = vpop.f32.mrf.mxu0
        %v1874 = vadd.f32 %v1684, %v1873
        %1875 = vmatmul.f32.gmra.mxu0 %v1760
        %v1876 = vpop.f32.mrf.mxu0
        %v1877 = vadd.f32 %v1684, %v1876
        %1878 = vmatmul.f32.gmra.mxu0 %v1763
        %v1879 = vpop.f32.mrf.mxu0
        %v1880 = vadd.f32 %v1684, %v1879
        %1881 = vmatmul.f32.gmra.mxu0 %v1766
        %v1882 = vpop.f32.mrf.mxu0
        %v1883 = vadd.f32 %v1684, %v1882
        %1884 = vmatmul.f32.gmra.mxu0 %v1769
        %v1885 = vpop.f32.mrf.mxu0
        %v1886 = vadd.f32 %v1684, %v1885
        %1887 = vmatmul.f32.gmra.mxu0 %v1772
        %v1888 = vpop.f32.mrf.mxu0
        %v1889 = vadd.f32 %v1684, %v1888
        %1890 = vmatmul.f32.gmra.mxu0 %v1775
        %v1891 = vpop.f32.mrf.mxu0
        %v1892 = vadd.f32 %v1684, %v1891
        %1893 = vmatmul.f32.gmra.mxu0 %v1778
        %v1894 = vpop.f32.mrf.mxu0
        %v1895 = vadd.f32 %v1684, %v1894
        %1896 = vmatmul.f32.gmra.mxu0 %v1781
        %v1897 = vpop.f32.mrf.mxu0
        %v1898 = vadd.f32 %v1684, %v1897
        %1899 = vdwg.mxu0
        %vm1900 = vcmp.ge.f32.partialorder %v1805, 0.0
        %vm1901 = vcmp.ge.f32.partialorder %v1808, 0.0
        %vm1902 = vcmp.ge.f32.partialorder %v1811, 0.0
        %vm1903 = vcmp.ge.f32.partialorder %v1814, 0.0
        %vm1904 = vcmp.ge.f32.partialorder %v1817, 0.0
        %vm1905 = vcmp.ge.f32.partialorder %v1820, 0.0
        %vm1906 = vcmp.ge.f32.partialorder %v1823, 0.0
        %vm1907 = vcmp.ge.f32.partialorder %v1826, 0.0
        %vm1908 = vcmp.ge.f32.partialorder %v1829, 0.0
        %vm1909 = vcmp.ge.f32.partialorder %v1832, 0.0
        %vm1910 = vcmp.ge.f32.partialorder %v1835, 0.0
        %vm1911 = vcmp.ge.f32.partialorder %v1838, 0.0
        %vm1912 = vcmp.ge.f32.partialorder %v1841, 0.0
        %vm1913 = vcmp.ge.f32.partialorder %v1844, 0.0
        %vm1914 = vcmp.ge.f32.partialorder %v1847, 0.0
        %vm1915 = vcmp.ge.f32.partialorder %v1850, 0.0
        %vm1916 = vcmp.ge.f32.partialorder %v1853, 0.0
        %vm1917 = vcmp.ge.f32.partialorder %v1856, 0.0
        %vm1918 = vcmp.ge.f32.partialorder %v1859, 0.0
        %vm1919 = vcmp.ge.f32.partialorder %v1862, 0.0
        %vm1920 = vcmp.ge.f32.partialorder %v1865, 0.0
        %vm1921 = vcmp.ge.f32.partialorder %v1868, 0.0
        %vm1922 = vcmp.ge.f32.partialorder %v1871, 0.0
        %vm1923 = vcmp.ge.f32.partialorder %v1874, 0.0
        %vm1924 = vcmp.ge.f32.partialorder %v1877, 0.0
        %vm1925 = vcmp.ge.f32.partialorder %v1880, 0.0
        %vm1926 = vcmp.ge.f32.partialorder %v1883, 0.0
        %vm1927 = vcmp.ge.f32.partialorder %v1886, 0.0
        %vm1928 = vcmp.ge.f32.partialorder %v1889, 0.0
        %vm1929 = vcmp.ge.f32.partialorder %v1892, 0.0
        %vm1930 = vcmp.ge.f32.partialorder %v1895, 0.0
        %vm1931 = vcmp.ge.f32.partialorder %v1898, 0.0
        %v1932 = vmul.f32 %v1805, 0.2
        %v1933 = vmul.f32 %v1808, 0.2
        %v1934 = vmul.f32 %v1811, 0.2
        %v1935 = vmul.f32 %v1814, 0.2
        %v1936 = vmul.f32 %v1817, 0.2
        %v1937 = vmul.f32 %v1820, 0.2
        %v1938 = vmul.f32 %v1823, 0.2
        %v1939 = vmul.f32 %v1826, 0.2
        %v1940 = vmul.f32 %v1829, 0.2
        %v1941 = vmul.f32 %v1832, 0.2
        %v1942 = vmul.f32 %v1835, 0.2
        %v1943 = vmul.f32 %v1838, 0.2
        %v1944 = vmul.f32 %v1841, 0.2
        %v1945 = vmul.f32 %v1844, 0.2
        %v1946 = vmul.f32 %v1847, 0.2
        %v1947 = vmul.f32 %v1850, 0.2
        %v1948 = vmul.f32 %v1853, 0.2
        %v1949 = vmul.f32 %v1856, 0.2
        %v1950 = vmul.f32 %v1859, 0.2
        %v1951 = vmul.f32 %v1862, 0.2
        %v1952 = vmul.f32 %v1865, 0.2
        %v1953 = vmul.f32 %v1868, 0.2
        %v1954 = vmul.f32 %v1871, 0.2
        %v1955 = vmul.f32 %v1874, 0.2
        %v1956 = vmul.f32 %v1877, 0.2
        %v1957 = vmul.f32 %v1880, 0.2
        %v1958 = vmul.f32 %v1883, 0.2
        %v1959 = vmul.f32 %v1886, 0.2
        %v1960 = vmul.f32 %v1889, 0.2
        %v1961 = vmul.f32 %v1892, 0.2
        %v1962 = vmul.f32 %v1895, 0.2
        %v1963 = vmul.f32 %v1898, 0.2
        %v1964 = vsel %vm1900, %v1805, %v1932
        %v1965 = vsel %vm1901, %v1808, %v1933
        %v1966 = vsel %vm1902, %v1811, %v1934
        %v1967 = vsel %vm1903, %v1814, %v1935
        %v1968 = vsel %vm1904, %v1817, %v1936
        %v1969 = vsel %vm1905, %v1820, %v1937
        %v1970 = vsel %vm1906, %v1823, %v1938
        %v1971 = vsel %vm1907, %v1826, %v1939
        %v1972 = vsel %vm1908, %v1829, %v1940
        %v1973 = vsel %vm1909, %v1832, %v1941
        %v1974 = vsel %vm1910, %v1835, %v1942
        %v1975 = vsel %vm1911, %v1838, %v1943
        %v1976 = vsel %vm1912, %v1841, %v1944
        %v1977 = vsel %vm1913, %v1844, %v1945
        %v1978 = vsel %vm1914, %v1847, %v1946
        %v1979 = vsel %vm1915, %v1850, %v1947
        %v1980 = vsel %vm1916, %v1853, %v1948
        %v1981 = vsel %vm1917, %v1856, %v1949
        %v1982 = vsel %vm1918, %v1859, %v1950
        %v1983 = vsel %vm1919, %v1862, %v1951
        %v1984 = vsel %vm1920, %v1865, %v1952
        %v1985 = vsel %vm1921, %v1868, %v1953
        %v1986 = vsel %vm1922, %v1871, %v1954
        %v1987 = vsel %vm1923, %v1874, %v1955
        %v1988 = vsel %vm1924, %v1877, %v1956
        %v1989 = vsel %vm1925, %v1880, %v1957
        %v1990 = vsel %vm1926, %v1883, %v1958
        %v1991 = vsel %vm1927, %v1886, %v1959
        %v1992 = vsel %vm1928, %v1889, %v1960
        %v1993 = vsel %vm1929, %v1892, %v1961
        %v1994 = vsel %vm1930, %v1895, %v1962
        %v1995 = vsel %vm1931, %v1898, %v1963
        %v2012 = vrot.slane %v1964, 1
        %v2013 = vrot.slane %v1966, 1
        %v2014 = vrot.slane %v1968, 1
        %v2015 = vrot.slane %v1970, 1
        %v2016 = vrot.slane %v1972, 1
        %v2017 = vrot.slane %v1974, 1
        %v2018 = vrot.slane %v1976, 1
        %v2019 = vrot.slane %v1978, 1
        %v2020 = vrot.slane %v1980, 1
        %v2021 = vrot.slane %v1982, 1
        %v2022 = vrot.slane %v1984, 1
        %v2023 = vrot.slane %v1986, 1
        %v2024 = vrot.slane %v1988, 1
        %v2025 = vrot.slane %v1990, 1
        %v2026 = vrot.slane %v1992, 1
        %v2027 = vrot.slane %v1994, 1
        %v2060 = vrot.slane %v1964, 7
        %v2061 = vrot.slane %v1965, 7
        %v2062 = vsel %vm331, %v2060, %v2061
        %v2063 = vrot.slane %v1966, 7
        %v2064 = vrot.slane %v1967, 7
        %v2065 = vsel %vm331, %v2063, %v2064
        %v2066 = vrot.slane %v1968, 7
        %v2067 = vrot.slane %v1969, 7
        %v2068 = vsel %vm331, %v2066, %v2067
        %v2069 = vrot.slane %v1970, 7
        %v2070 = vrot.slane %v1971, 7
        %v2071 = vsel %vm331, %v2069, %v2070
        %v2072 = vrot.slane %v1972, 7
        %v2073 = vrot.slane %v1973, 7
        %v2074 = vsel %vm331, %v2072, %v2073
        %v2075 = vrot.slane %v1974, 7
        %v2076 = vrot.slane %v1975, 7
        %v2077 = vsel %vm331, %v2075, %v2076
        %v2078 = vrot.slane %v1976, 7
        %v2079 = vrot.slane %v1977, 7
        %v2080 = vsel %vm331, %v2078, %v2079
        %v2081 = vrot.slane %v1978, 7
        %v2082 = vrot.slane %v1979, 7
        %v2083 = vsel %vm331, %v2081, %v2082
        %v2084 = vrot.slane %v1980, 7
        %v2085 = vrot.slane %v1981, 7
        %v2086 = vsel %vm331, %v2084, %v2085
        %v2087 = vrot.slane %v1982, 7
        %v2088 = vrot.slane %v1983, 7
        %v2089 = vsel %vm331, %v2087, %v2088
        %v2090 = vrot.slane %v1984, 7
        %v2091 = vrot.slane %v1985, 7
        %v2092 = vsel %vm331, %v2090, %v2091
        %v2093 = vrot.slane %v1986, 7
        %v2094 = vrot.slane %v1987, 7
        %v2095 = vsel %vm331, %v2093, %v2094
        %v2096 = vrot.slane %v1988, 7
        %v2097 = vrot.slane %v1989, 7
        %v2098 = vsel %vm331, %v2096, %v2097
        %v2099 = vrot.slane %v1990, 7
        %v2100 = vrot.slane %v1991, 7
        %v2101 = vsel %vm331, %v2099, %v2100
        %v2102 = vrot.slane %v1992, 7
        %v2103 = vrot.slane %v1993, 7
        %v2104 = vsel %vm331, %v2102, %v2103
        %v2105 = vrot.slane %v1994, 7
        %v2106 = vrot.slane %v1995, 7
        %v2107 = vsel %vm331, %v2105, %v2106
        %v2155 = vrot.slane %v1965, 5
        %v2156 = vrot.slane %v1967, 5
        %v2157 = vrot.slane %v1969, 5
        %v2158 = vrot.slane %v1971, 5
        %v2159 = vrot.slane %v1973, 5
        %v2160 = vrot.slane %v1975, 5
        %v2161 = vrot.slane %v1977, 5
        %v2162 = vrot.slane %v1979, 5
        %v2163 = vrot.slane %v1981, 5
        %v2164 = vrot.slane %v1983, 5
        %v2165 = vrot.slane %v1985, 5
        %v2166 = vrot.slane %v1987, 5
        %v2167 = vrot.slane %v1989, 5
        %v2168 = vrot.slane %v1991, 5
        %v2169 = vrot.slane %v1993, 5
        %v2170 = vrot.slane %v1995, 5
        %v2187 = vsel %vm331, %v2012, %v2060
        %v2188 = vsel %vm331, %v2013, %v2063
        %v2189 = vsel %vm331, %v2014, %v2066
        %v2190 = vsel %vm331, %v2015, %v2069
        %v2191 = vsel %vm331, %v2016, %v2072
        %v2192 = vsel %vm331, %v2017, %v2075
        %v2193 = vsel %vm331, %v2018, %v2078
        %v2194 = vsel %vm331, %v2019, %v2081
        %v2195 = vsel %vm331, %v2020, %v2084
        %v2196 = vsel %vm331, %v2021, %v2087
        %v2197 = vsel %vm331, %v2022, %v2090
        %v2198 = vsel %vm331, %v2023, %v2093
        %v2199 = vsel %vm331, %v2024, %v2096
        %v2200 = vsel %vm331, %v2025, %v2099
        %v2201 = vsel %vm331, %v2026, %v2102
        %v2202 = vsel %vm331, %v2027, %v2105
        %v2203 = vsel %vm331, %v2061, %v2155
        %v2204 = vsel %vm331, %v2064, %v2156
        %v2205 = vsel %vm331, %v2067, %v2157
        %v2206 = vsel %vm331, %v2070, %v2158
        %v2207 = vsel %vm331, %v2073, %v2159
        %v2208 = vsel %vm331, %v2076, %v2160
        %v2209 = vsel %vm331, %v2079, %v2161
        %v2210 = vsel %vm331, %v2082, %v2162
        %v2211 = vsel %vm331, %v2085, %v2163
        %v2212 = vsel %vm331, %v2088, %v2164
        %v2213 = vsel %vm331, %v2091, %v2165
        %v2214 = vsel %vm331, %v2094, %v2166
        %v2215 = vsel %vm331, %v2097, %v2167
        %v2216 = vsel %vm331, %v2100, %v2168
        %v2217 = vsel %vm331, %v2103, %v2169
        %v2218 = vsel %vm331, %v2106, %v2170
        %v2249 = vrot.slane %v2188, 1
        %v2250 = vrot.slane %v2065, 1
        %v2251 = vsel %vm521, %v2249, %v2250
        %v2252 = vrot.slane %v2204, 1
        %v2253 = vsel %vm521, %v2250, %v2252
        %v2254 = vrot.slane %v2187, 1
        %v2255 = vrot.slane %v2062, 1
        %v2256 = vsel %vm521, %v2254, %v2255
        %v2257 = vrot.slane %v2203, 1
        %v2258 = vsel %vm521, %v2255, %v2257
        %v2259 = vrot.slane %v2189, 1
        %v2260 = vrot.slane %v2068, 1
        %v2261 = vsel %vm521, %v2259, %v2260
        %v2262 = vrot.slane %v2205, 1
        %v2263 = vsel %vm521, %v2260, %v2262
        %v2264 = vrot.slane %v2190, 1
        %v2265 = vrot.slane %v2071, 1
        %v2266 = vsel %vm521, %v2264, %v2265
        %v2267 = vrot.slane %v2206, 1
        %v2268 = vsel %vm521, %v2265, %v2267
        %v2269 = vrot.slane %v2191, 1
        %v2270 = vrot.slane %v2074, 1
        %v2271 = vsel %vm521, %v2269, %v2270
        %v2272 = vrot.slane %v2207, 1
        %v2273 = vsel %vm521, %v2270, %v2272
        %v2274 = vrot.slane %v2192, 1
        %v2275 = vrot.slane %v2077, 1
        %v2276 = vsel %vm521, %v2274, %v2275
        %v2277 = vrot.slane %v2208, 1
        %v2278 = vsel %vm521, %v2275, %v2277
        %v2279 = vrot.slane %v2193, 1
        %v2280 = vrot.slane %v2080, 1
        %v2281 = vsel %vm521, %v2279, %v2280
        %v2282 = vrot.slane %v2209, 1
        %v2283 = vsel %vm521, %v2280, %v2282
        %v2284 = vrot.slane %v2194, 1
        %v2285 = vrot.slane %v2083, 1
        %v2286 = vsel %vm521, %v2284, %v2285
        %v2287 = vrot.slane %v2210, 1
        %v2288 = vsel %vm521, %v2285, %v2287
        %v2289 = vrot.slane %v2195, 1
        %v2290 = vrot.slane %v2086, 1
        %v2291 = vsel %vm521, %v2289, %v2290
        %v2292 = vrot.slane %v2211, 1
        %v2293 = vsel %vm521, %v2290, %v2292
        %v2294 = vrot.slane %v2196, 1
        %v2295 = vrot.slane %v2089, 1
        %v2296 = vsel %vm521, %v2294, %v2295
        %v2297 = vrot.slane %v2212, 1
        %v2298 = vsel %vm521, %v2295, %v2297
        %v2299 = vrot.slane %v2197, 1
        %v2300 = vrot.slane %v2092, 1
        %v2301 = vsel %vm521, %v2299, %v2300
        %v2302 = vrot.slane %v2213, 1
        %v2303 = vsel %vm521, %v2300, %v2302
        %v2304 = vrot.slane %v2198, 1
        %v2305 = vrot.slane %v2095, 1
        %v2306 = vsel %vm521, %v2304, %v2305
        %v2307 = vrot.slane %v2214, 1
        %v2308 = vsel %vm521, %v2305, %v2307
        %v2309 = vrot.slane %v2199, 1
        %v2310 = vrot.slane %v2098, 1
        %v2311 = vsel %vm521, %v2309, %v2310
        %v2312 = vrot.slane %v2215, 1
        %v2313 = vsel %vm521, %v2310, %v2312
        %v2314 = vrot.slane %v2200, 1
        %v2315 = vrot.slane %v2101, 1
        %v2316 = vsel %vm521, %v2314, %v2315
        %v2317 = vrot.slane %v2216, 1
        %v2318 = vsel %vm521, %v2315, %v2317
        %v2319 = vrot.slane %v2201, 1
        %v2320 = vrot.slane %v2104, 1
        %v2321 = vsel %vm521, %v2319, %v2320
        %v2322 = vrot.slane %v2217, 1
        %v2323 = vsel %vm521, %v2320, %v2322
        %v2324 = vrot.slane %v2188, 2
        %v2325 = vrot.slane %v2065, 2
        %v2326 = vsel %vm597, %v2324, %v2325
        %v2327 = vrot.slane %v2204, 2
        %v2328 = vsel %vm597, %v2325, %v2327
        %v2329 = vrot.slane %v2187, 2
        %v2330 = vrot.slane %v2062, 2
        %v2331 = vsel %vm597, %v2329, %v2330
        %v2332 = vrot.slane %v2203, 2
        %v2333 = vsel %vm597, %v2330, %v2332
        %v2334 = vrot.slane %v2189, 2
        %v2335 = vrot.slane %v2068, 2
        %v2336 = vsel %vm597, %v2334, %v2335
        %v2337 = vrot.slane %v2205, 2
        %v2338 = vsel %vm597, %v2335, %v2337
        %v2339 = vrot.slane %v2190, 2
        %v2340 = vrot.slane %v2071, 2
        %v2341 = vsel %vm597, %v2339, %v2340
        %v2342 = vrot.slane %v2206, 2
        %v2343 = vsel %vm597, %v2340, %v2342
        %v2344 = vrot.slane %v2191, 2
        %v2345 = vrot.slane %v2074, 2
        %v2346 = vsel %vm597, %v2344, %v2345
        %v2347 = vrot.slane %v2207, 2
        %v2348 = vsel %vm597, %v2345, %v2347
        %v2349 = vrot.slane %v2192, 2
        %v2350 = vrot.slane %v2077, 2
        %v2351 = vsel %vm597, %v2349, %v2350
        %v2352 = vrot.slane %v2208, 2
        %v2353 = vsel %vm597, %v2350, %v2352
        %v2354 = vrot.slane %v2193, 2
        %v2355 = vrot.slane %v2080, 2
        %v2356 = vsel %vm597, %v2354, %v2355
        %v2357 = vrot.slane %v2209, 2
        %v2358 = vsel %vm597, %v2355, %v2357
        %v2359 = vrot.slane %v2194, 2
        %v2360 = vrot.slane %v2083, 2
        %v2361 = vsel %vm597, %v2359, %v2360
        %v2362 = vrot.slane %v2210, 2
        %v2363 = vsel %vm597, %v2360, %v2362
        %v2364 = vrot.slane %v2195, 2
        %v2365 = vrot.slane %v2086, 2
        %v2366 = vsel %vm597, %v2364, %v2365
        %v2367 = vrot.slane %v2211, 2
        %v2368 = vsel %vm597, %v2365, %v2367
        %v2369 = vrot.slane %v2196, 2
        %v2370 = vrot.slane %v2089, 2
        %v2371 = vsel %vm597, %v2369, %v2370
        %v2372 = vrot.slane %v2212, 2
        %v2373 = vsel %vm597, %v2370, %v2372
        %v2374 = vrot.slane %v2197, 2
        %v2375 = vrot.slane %v2092, 2
        %v2376 = vsel %vm597, %v2374, %v2375
        %v2377 = vrot.slane %v2213, 2
        %v2378 = vsel %vm597, %v2375, %v2377
        %v2379 = vrot.slane %v2198, 2
        %v2380 = vrot.slane %v2095, 2
        %v2381 = vsel %vm597, %v2379, %v2380
        %v2382 = vrot.slane %v2214, 2
        %v2383 = vsel %vm597, %v2380, %v2382
        %v2384 = vrot.slane %v2199, 2
        %v2385 = vrot.slane %v2098, 2
        %v2386 = vsel %vm597, %v2384, %v2385
        %v2387 = vrot.slane %v2215, 2
        %v2388 = vsel %vm597, %v2385, %v2387
        %v2389 = vrot.slane %v2200, 2
        %v2390 = vrot.slane %v2101, 2
        %v2391 = vsel %vm597, %v2389, %v2390
        %v2392 = vrot.slane %v2216, 2
        %v2393 = vsel %vm597, %v2390, %v2392
        %v2394 = vrot.slane %v2201, 2
        %v2395 = vrot.slane %v2104, 2
        %v2396 = vsel %vm597, %v2394, %v2395
        %v2397 = vrot.slane %v2217, 2
        %v2398 = vsel %vm597, %v2395, %v2397
        %v2401 = vrot.slane %v2202, 1
        %v2402 = vrot.slane %v2107, 1
        %v2403 = vsel %vm521, %v2401, %v2402
        %v2404 = vrot.slane %v2218, 1
        %v2405 = vsel %vm521, %v2402, %v2404
        %v2406 = vrot.slane %v2202, 2
        %v2407 = vrot.slane %v2107, 2
        %v2408 = vsel %vm597, %v2406, %v2407
        %v2409 = vrot.slane %v2218, 2
        %v2410 = vsel %vm597, %v2407, %v2409
        %2411 = vrot.lane.b32.xlu0 %v2251, 4
        %v2412 = vpop.permute.xlu0 %2411
        %2413 = vrot.lane.b32.xlu0 %v2253, 4
        %v2414 = vpop.permute.xlu0 %2413
        %2415 = vrot.lane.b32.xlu0 %v2256, 4
        %v2416 = vpop.permute.xlu0 %2415
        %2417 = vrot.lane.b32.xlu0 %v2258, 4
        %v2418 = vpop.permute.xlu0 %2417
        %2419 = vrot.lane.b32.xlu0 %v2261, 4
        %v2420 = vpop.permute.xlu0 %2419
        %2421 = vrot.lane.b32.xlu0 %v2263, 4
        %v2422 = vpop.permute.xlu0 %2421
        %2423 = vrot.lane.b32.xlu0 %v2266, 4
        %v2424 = vpop.permute.xlu0 %2423
        %2425 = vrot.lane.b32.xlu0 %v2268, 4
        %v2426 = vpop.permute.xlu0 %2425
        %2427 = vrot.lane.b32.xlu0 %v2271, 4
        %v2428 = vpop.permute.xlu0 %2427
        %2429 = vrot.lane.b32.xlu0 %v2273, 4
        %v2430 = vpop.permute.xlu0 %2429
        %2431 = vrot.lane.b32.xlu0 %v2276, 4
        %v2432 = vpop.permute.xlu0 %2431
        %2433 = vrot.lane.b32.xlu0 %v2278, 4
        %v2434 = vpop.permute.xlu0 %2433
        %2435 = vrot.lane.b32.xlu0 %v2281, 4
        %v2436 = vpop.permute.xlu0 %2435
        %2437 = vrot.lane.b32.xlu0 %v2283, 4
        %v2438 = vpop.permute.xlu0 %2437
        %2439 = vrot.lane.b32.xlu0 %v2286, 4
        %v2440 = vpop.permute.xlu0 %2439
        %2441 = vrot.lane.b32.xlu0 %v2288, 4
        %v2442 = vpop.permute.xlu0 %2441
        %2443 = vrot.lane.b32.xlu0 %v2291, 4
        %v2444 = vpop.permute.xlu0 %2443
        %2445 = vrot.lane.b32.xlu0 %v2293, 4
        %v2446 = vpop.permute.xlu0 %2445
        %2447 = vrot.lane.b32.xlu0 %v2296, 4
        %v2448 = vpop.permute.xlu0 %2447
        %2449 = vrot.lane.b32.xlu0 %v2298, 4
        %v2450 = vpop.permute.xlu0 %2449
        %2451 = vrot.lane.b32.xlu0 %v2301, 4
        %v2452 = vpop.permute.xlu0 %2451
        %2453 = vrot.lane.b32.xlu0 %v2303, 4
        %v2454 = vpop.permute.xlu0 %2453
        %2455 = vrot.lane.b32.xlu0 %v2306, 4
        %v2456 = vpop.permute.xlu0 %2455
        %2457 = vrot.lane.b32.xlu0 %v2308, 4
        %v2458 = vpop.permute.xlu0 %2457
        %2459 = vrot.lane.b32.xlu0 %v2311, 4
        %v2460 = vpop.permute.xlu0 %2459
        %2461 = vrot.lane.b32.xlu0 %v2313, 4
        %v2462 = vpop.permute.xlu0 %2461
        %2463 = vrot.lane.b32.xlu0 %v2316, 4
        %v2464 = vpop.permute.xlu0 %2463
        %2465 = vrot.lane.b32.xlu0 %v2318, 4
        %v2466 = vpop.permute.xlu0 %2465
        %2467 = vrot.lane.b32.xlu0 %v2321, 4
        %v2468 = vpop.permute.xlu0 %2467
        %2469 = vrot.lane.b32.xlu0 %v2323, 4
        %v2470 = vpop.permute.xlu0 %2469
        %2501 = vrot.lane.b32.xlu0 %v2326, 8
        %v2502 = vpop.permute.xlu0 %2501
        %2503 = vrot.lane.b32.xlu0 %v2328, 8
        %v2504 = vpop.permute.xlu0 %2503
        %2505 = vrot.lane.b32.xlu0 %v2331, 8
        %v2506 = vpop.permute.xlu0 %2505
        %2507 = vrot.lane.b32.xlu0 %v2333, 8
        %v2508 = vpop.permute.xlu0 %2507
        %2509 = vrot.lane.b32.xlu0 %v2336, 8
        %v2510 = vpop.permute.xlu0 %2509
        %2511 = vrot.lane.b32.xlu0 %v2338, 8
        %v2512 = vpop.permute.xlu0 %2511
        %2513 = vrot.lane.b32.xlu0 %v2341, 8
        %v2514 = vpop.permute.xlu0 %2513
        %2515 = vrot.lane.b32.xlu0 %v2343, 8
        %v2516 = vpop.permute.xlu0 %2515
        %2517 = vrot.lane.b32.xlu0 %v2346, 8
        %v2518 = vpop.permute.xlu0 %2517
        %2519 = vrot.lane.b32.xlu0 %v2348, 8
        %v2520 = vpop.permute.xlu0 %2519
        %2521 = vrot.lane.b32.xlu0 %v2351, 8
        %v2522 = vpop.permute.xlu0 %2521
        %2523 = vrot.lane.b32.xlu0 %v2353, 8
        %v2524 = vpop.permute.xlu0 %2523
        %2525 = vrot.lane.b32.xlu0 %v2356, 8
        %v2526 = vpop.permute.xlu0 %2525
        %2527 = vrot.lane.b32.xlu0 %v2358, 8
        %v2528 = vpop.permute.xlu0 %2527
        %2529 = vrot.lane.b32.xlu0 %v2361, 8
        %v2530 = vpop.permute.xlu0 %2529
        %2531 = vrot.lane.b32.xlu0 %v2363, 8
        %v2532 = vpop.permute.xlu0 %2531
        %2533 = vrot.lane.b32.xlu0 %v2366, 8
        %v2534 = vpop.permute.xlu0 %2533
        %2535 = vrot.lane.b32.xlu0 %v2368, 8
        %v2536 = vpop.permute.xlu0 %2535
        %2537 = vrot.lane.b32.xlu0 %v2371, 8
        %v2538 = vpop.permute.xlu0 %2537
        %2539 = vrot.lane.b32.xlu0 %v2373, 8
        %v2540 = vpop.permute.xlu0 %2539
        %2541 = vrot.lane.b32.xlu0 %v2376, 8
        %v2542 = vpop.permute.xlu0 %2541
        %2543 = vrot.lane.b32.xlu0 %v2378, 8
        %v2544 = vpop.permute.xlu0 %2543
        %2545 = vrot.lane.b32.xlu0 %v2381, 8
        %v2546 = vpop.permute.xlu0 %2545
        %2547 = vrot.lane.b32.xlu0 %v2383, 8
        %v2548 = vpop.permute.xlu0 %2547
        %2549 = vrot.lane.b32.xlu0 %v2386, 8
        %v2550 = vpop.permute.xlu0 %2549
        %2551 = vrot.lane.b32.xlu0 %v2388, 8
        %v2552 = vpop.permute.xlu0 %2551
        %2553 = vrot.lane.b32.xlu0 %v2391, 8
        %v2554 = vpop.permute.xlu0 %2553
        %2555 = vrot.lane.b32.xlu0 %v2393, 8
        %v2556 = vpop.permute.xlu0 %2555
        %2557 = vrot.lane.b32.xlu0 %v2396, 8
        %v2558 = vpop.permute.xlu0 %2557
        %2559 = vrot.lane.b32.xlu0 %v2398, 8
        %v2560 = vpop.permute.xlu0 %2559
        %2591 = vrot.lane.b32.xlu0 %v2187, 12
        %v2592 = vpop.permute.xlu0 %2591
        %2593 = vrot.lane.b32.xlu0 %v2062, 12
        %v2594 = vpop.permute.xlu0 %2593
        %2595 = vrot.lane.b32.xlu0 %v2188, 12
        %v2596 = vpop.permute.xlu0 %2595
        %2597 = vrot.lane.b32.xlu0 %v2065, 12
        %v2598 = vpop.permute.xlu0 %2597
        %2599 = vrot.lane.b32.xlu0 %v2189, 12
        %v2600 = vpop.permute.xlu0 %2599
        %2601 = vrot.lane.b32.xlu0 %v2068, 12
        %v2602 = vpop.permute.xlu0 %2601
        %2603 = vrot.lane.b32.xlu0 %v2190, 12
        %v2604 = vpop.permute.xlu0 %2603
        %2605 = vrot.lane.b32.xlu0 %v2071, 12
        %v2606 = vpop.permute.xlu0 %2605
        %2607 = vrot.lane.b32.xlu0 %v2191, 12
        %v2608 = vpop.permute.xlu0 %2607
        %2609 = vrot.lane.b32.xlu0 %v2074, 12
        %v2610 = vpop.permute.xlu0 %2609
        %2611 = vrot.lane.b32.xlu0 %v2192, 12
        %v2612 = vpop.permute.xlu0 %2611
        %2613 = vrot.lane.b32.xlu0 %v2077, 12
        %v2614 = vpop.permute.xlu0 %2613
        %2615 = vrot.lane.b32.xlu0 %v2193, 12
        %v2616 = vpop.permute.xlu0 %2615
        %2617 = vrot.lane.b32.xlu0 %v2080, 12
        %v2618 = vpop.permute.xlu0 %2617
        %2619 = vrot.lane.b32.xlu0 %v2194, 12
        %v2620 = vpop.permute.xlu0 %2619
        %2621 = vrot.lane.b32.xlu0 %v2083, 12
        %v2622 = vpop.permute.xlu0 %2621
        %2623 = vrot.lane.b32.xlu0 %v2195, 12
        %v2624 = vpop.permute.xlu0 %2623
        %2625 = vrot.lane.b32.xlu0 %v2086, 12
        %v2626 = vpop.permute.xlu0 %2625
        %2627 = vrot.lane.b32.xlu0 %v2196, 12
        %v2628 = vpop.permute.xlu0 %2627
        %2629 = vrot.lane.b32.xlu0 %v2089, 12
        %v2630 = vpop.permute.xlu0 %2629
        %2631 = vrot.lane.b32.xlu0 %v2197, 12
        %v2632 = vpop.permute.xlu0 %2631
        %2633 = vrot.lane.b32.xlu0 %v2092, 12
        %v2634 = vpop.permute.xlu0 %2633
        %2635 = vrot.lane.b32.xlu0 %v2198, 12
        %v2636 = vpop.permute.xlu0 %2635
        %2637 = vrot.lane.b32.xlu0 %v2095, 12
        %v2638 = vpop.permute.xlu0 %2637
        %2639 = vrot.lane.b32.xlu0 %v2199, 12
        %v2640 = vpop.permute.xlu0 %2639
        %2641 = vrot.lane.b32.xlu0 %v2098, 12
        %v2642 = vpop.permute.xlu0 %2641
        %2643 = vrot.lane.b32.xlu0 %v2200, 12
        %v2644 = vpop.permute.xlu0 %2643
        %2645 = vrot.lane.b32.xlu0 %v2101, 12
        %v2646 = vpop.permute.xlu0 %2645
        %2647 = vrot.lane.b32.xlu0 %v2201, 12
        %v2648 = vpop.permute.xlu0 %2647
        %2649 = vrot.lane.b32.xlu0 %v2104, 12
        %v2650 = vpop.permute.xlu0 %2649
        %2651 = vrot.lane.b32.xlu0 %v2202, 12
        %v2652 = vpop.permute.xlu0 %2651
        %2653 = vrot.lane.b32.xlu0 %v2107, 12
        %v2654 = vpop.permute.xlu0 %2653
        %2687 = vrot.lane.b32.xlu0 %v2256, 16
        %v2688 = vpop.permute.xlu0 %2687
        %2689 = vrot.lane.b32.xlu0 %v2258, 16
        %v2690 = vpop.permute.xlu0 %2689
        %2691 = vrot.lane.b32.xlu0 %v2251, 16
        %v2692 = vpop.permute.xlu0 %2691
        %2693 = vrot.lane.b32.xlu0 %v2253, 16
        %v2694 = vpop.permute.xlu0 %2693
        %2695 = vrot.lane.b32.xlu0 %v2261, 16
        %v2696 = vpop.permute.xlu0 %2695
        %2697 = vrot.lane.b32.xlu0 %v2263, 16
        %v2698 = vpop.permute.xlu0 %2697
        %2699 = vrot.lane.b32.xlu0 %v2266, 16
        %v2700 = vpop.permute.xlu0 %2699
        %2701 = vrot.lane.b32.xlu0 %v2268, 16
        %v2702 = vpop.permute.xlu0 %2701
        %2703 = vrot.lane.b32.xlu0 %v2271, 16
        %v2704 = vpop.permute.xlu0 %2703
        %2705 = vrot.lane.b32.xlu0 %v2273, 16
        %v2706 = vpop.permute.xlu0 %2705
        %2707 = vrot.lane.b32.xlu0 %v2276, 16
        %v2708 = vpop.permute.xlu0 %2707
        %2709 = vrot.lane.b32.xlu0 %v2278, 16
        %v2710 = vpop.permute.xlu0 %2709
        %2711 = vrot.lane.b32.xlu0 %v2281, 16
        %v2712 = vpop.permute.xlu0 %2711
        %2713 = vrot.lane.b32.xlu0 %v2283, 16
        %v2714 = vpop.permute.xlu0 %2713
        %2715 = vrot.lane.b32.xlu0 %v2286, 16
        %v2716 = vpop.permute.xlu0 %2715
        %2717 = vrot.lane.b32.xlu0 %v2288, 16
        %v2718 = vpop.permute.xlu0 %2717
        %2719 = vrot.lane.b32.xlu0 %v2291, 16
        %v2720 = vpop.permute.xlu0 %2719
        %2721 = vrot.lane.b32.xlu0 %v2293, 16
        %v2722 = vpop.permute.xlu0 %2721
        %2723 = vrot.lane.b32.xlu0 %v2296, 16
        %v2724 = vpop.permute.xlu0 %2723
        %2725 = vrot.lane.b32.xlu0 %v2298, 16
        %v2726 = vpop.permute.xlu0 %2725
        %2727 = vrot.lane.b32.xlu0 %v2301, 16
        %v2728 = vpop.permute.xlu0 %2727
        %2729 = vrot.lane.b32.xlu0 %v2303, 16
        %v2730 = vpop.permute.xlu0 %2729
        %2731 = vrot.lane.b32.xlu0 %v2306, 16
        %v2732 = vpop.permute.xlu0 %2731
        %2733 = vrot.lane.b32.xlu0 %v2308, 16
        %v2734 = vpop.permute.xlu0 %2733
        %2735 = vrot.lane.b32.xlu0 %v2311, 16
        %v2736 = vpop.permute.xlu0 %2735
        %2737 = vrot.lane.b32.xlu0 %v2313, 16
        %v2738 = vpop.permute.xlu0 %2737
        %2739 = vrot.lane.b32.xlu0 %v2316, 16
        %v2740 = vpop.permute.xlu0 %2739
        %2741 = vrot.lane.b32.xlu0 %v2318, 16
        %v2742 = vpop.permute.xlu0 %2741
        %2743 = vrot.lane.b32.xlu0 %v2321, 16
        %v2744 = vpop.permute.xlu0 %2743
        %2745 = vrot.lane.b32.xlu0 %v2323, 16
        %v2746 = vpop.permute.xlu0 %2745
        %2747 = vrot.lane.b32.xlu0 %v2403, 16
        %v2748 = vpop.permute.xlu0 %2747
        %2749 = vrot.lane.b32.xlu0 %v2405, 16
        %v2750 = vpop.permute.xlu0 %2749
        %2783 = vrot.lane.b32.xlu0 %v2331, 20
        %v2784 = vpop.permute.xlu0 %2783
        %2785 = vrot.lane.b32.xlu0 %v2333, 20
        %v2786 = vpop.permute.xlu0 %2785
        %2787 = vrot.lane.b32.xlu0 %v2326, 20
        %v2788 = vpop.permute.xlu0 %2787
        %2789 = vrot.lane.b32.xlu0 %v2328, 20
        %v2790 = vpop.permute.xlu0 %2789
        %2791 = vrot.lane.b32.xlu0 %v2336, 20
        %v2792 = vpop.permute.xlu0 %2791
        %2793 = vrot.lane.b32.xlu0 %v2338, 20
        %v2794 = vpop.permute.xlu0 %2793
        %2795 = vrot.lane.b32.xlu0 %v2341, 20
        %v2796 = vpop.permute.xlu0 %2795
        %2797 = vrot.lane.b32.xlu0 %v2343, 20
        %v2798 = vpop.permute.xlu0 %2797
        %2799 = vrot.lane.b32.xlu0 %v2346, 20
        %v2800 = vpop.permute.xlu0 %2799
        %2801 = vrot.lane.b32.xlu0 %v2348, 20
        %v2802 = vpop.permute.xlu0 %2801
        %2803 = vrot.lane.b32.xlu0 %v2351, 20
        %v2804 = vpop.permute.xlu0 %2803
        %2805 = vrot.lane.b32.xlu0 %v2353, 20
        %v2806 = vpop.permute.xlu0 %2805
        %2807 = vrot.lane.b32.xlu0 %v2356, 20
        %v2808 = vpop.permute.xlu0 %2807
        %2809 = vrot.lane.b32.xlu0 %v2358, 20
        %v2810 = vpop.permute.xlu0 %2809
        %2811 = vrot.lane.b32.xlu0 %v2361, 20
        %v2812 = vpop.permute.xlu0 %2811
        %2813 = vrot.lane.b32.xlu0 %v2363, 20
        %v2814 = vpop.permute.xlu0 %2813
        %2815 = vrot.lane.b32.xlu0 %v2366, 20
        %v2816 = vpop.permute.xlu0 %2815
        %2817 = vrot.lane.b32.xlu0 %v2368, 20
        %v2818 = vpop.permute.xlu0 %2817
        %2819 = vrot.lane.b32.xlu0 %v2371, 20
        %v2820 = vpop.permute.xlu0 %2819
        %2821 = vrot.lane.b32.xlu0 %v2373, 20
        %v2822 = vpop.permute.xlu0 %2821
        %2823 = vrot.lane.b32.xlu0 %v2376, 20
        %v2824 = vpop.permute.xlu0 %2823
        %2825 = vrot.lane.b32.xlu0 %v2378, 20
        %v2826 = vpop.permute.xlu0 %2825
        %2827 = vrot.lane.b32.xlu0 %v2381, 20
        %v2828 = vpop.permute.xlu0 %2827
        %2829 = vrot.lane.b32.xlu0 %v2383, 20
        %v2830 = vpop.permute.xlu0 %2829
        %2831 = vrot.lane.b32.xlu0 %v2386, 20
        %v2832 = vpop.permute.xlu0 %2831
        %2833 = vrot.lane.b32.xlu0 %v2388, 20
        %v2834 = vpop.permute.xlu0 %2833
        %2835 = vrot.lane.b32.xlu0 %v2391, 20
        %v2836 = vpop.permute.xlu0 %2835
        %2837 = vrot.lane.b32.xlu0 %v2393, 20
        %v2838 = vpop.permute.xlu0 %2837
        %2839 = vrot.lane.b32.xlu0 %v2396, 20
        %v2840 = vpop.permute.xlu0 %2839
        %2841 = vrot.lane.b32.xlu0 %v2398, 20
        %v2842 = vpop.permute.xlu0 %2841
        %2843 = vrot.lane.b32.xlu0 %v2408, 20
        %v2844 = vpop.permute.xlu0 %2843
        %2845 = vrot.lane.b32.xlu0 %v2410, 20
        %v2846 = vpop.permute.xlu0 %2845
        %2879 = vrot.lane.b32.xlu0 %v2188, 24
        %v2880 = vpop.permute.xlu0 %2879
        %2881 = vrot.lane.b32.xlu0 %v2065, 24
        %v2882 = vpop.permute.xlu0 %2881
        %2883 = vrot.lane.b32.xlu0 %v2189, 24
        %v2884 = vpop.permute.xlu0 %2883
        %2885 = vrot.lane.b32.xlu0 %v2068, 24
        %v2886 = vpop.permute.xlu0 %2885
        %2887 = vrot.lane.b32.xlu0 %v2190, 24
        %v2888 = vpop.permute.xlu0 %2887
        %2889 = vrot.lane.b32.xlu0 %v2071, 24
        %v2890 = vpop.permute.xlu0 %2889
        %2891 = vrot.lane.b32.xlu0 %v2191, 24
        %v2892 = vpop.permute.xlu0 %2891
        %2893 = vrot.lane.b32.xlu0 %v2074, 24
        %v2894 = vpop.permute.xlu0 %2893
        %2895 = vrot.lane.b32.xlu0 %v2192, 24
        %v2896 = vpop.permute.xlu0 %2895
        %2897 = vrot.lane.b32.xlu0 %v2077, 24
        %v2898 = vpop.permute.xlu0 %2897
        %2899 = vrot.lane.b32.xlu0 %v2193, 24
        %v2900 = vpop.permute.xlu0 %2899
        %2901 = vrot.lane.b32.xlu0 %v2080, 24
        %v2902 = vpop.permute.xlu0 %2901
        %2903 = vrot.lane.b32.xlu0 %v2194, 24
        %v2904 = vpop.permute.xlu0 %2903
        %2905 = vrot.lane.b32.xlu0 %v2083, 24
        %v2906 = vpop.permute.xlu0 %2905
        %2907 = vrot.lane.b32.xlu0 %v2195, 24
        %v2908 = vpop.permute.xlu0 %2907
        %2909 = vrot.lane.b32.xlu0 %v2086, 24
        %v2910 = vpop.permute.xlu0 %2909
        %2911 = vrot.lane.b32.xlu0 %v2196, 24
        %v2912 = vpop.permute.xlu0 %2911
        %2913 = vrot.lane.b32.xlu0 %v2089, 24
        %v2914 = vpop.permute.xlu0 %2913
        %2915 = vrot.lane.b32.xlu0 %v2197, 24
        %v2916 = vpop.permute.xlu0 %2915
        %2917 = vrot.lane.b32.xlu0 %v2092, 24
        %v2918 = vpop.permute.xlu0 %2917
        %2919 = vrot.lane.b32.xlu0 %v2198, 24
        %v2920 = vpop.permute.xlu0 %2919
        %2921 = vrot.lane.b32.xlu0 %v2095, 24
        %v2922 = vpop.permute.xlu0 %2921
        %2923 = vrot.lane.b32.xlu0 %v2199, 24
        %v2924 = vpop.permute.xlu0 %2923
        %2925 = vrot.lane.b32.xlu0 %v2098, 24
        %v2926 = vpop.permute.xlu0 %2925
        %2927 = vrot.lane.b32.xlu0 %v2200, 24
        %v2928 = vpop.permute.xlu0 %2927
        %2929 = vrot.lane.b32.xlu0 %v2101, 24
        %v2930 = vpop.permute.xlu0 %2929
        %2931 = vrot.lane.b32.xlu0 %v2201, 24
        %v2932 = vpop.permute.xlu0 %2931
        %2933 = vrot.lane.b32.xlu0 %v2104, 24
        %v2934 = vpop.permute.xlu0 %2933
        %2935 = vrot.lane.b32.xlu0 %v2202, 24
        %v2936 = vpop.permute.xlu0 %2935
        %2937 = vrot.lane.b32.xlu0 %v2107, 24
        %v2938 = vpop.permute.xlu0 %2937
        %2969 = vrot.lane.b32.xlu0 %v2251, 28
        %v2970 = vpop.permute.xlu0 %2969
        %2971 = vrot.lane.b32.xlu0 %v2253, 28
        %v2972 = vpop.permute.xlu0 %2971
        %2973 = vrot.lane.b32.xlu0 %v2261, 28
        %v2974 = vpop.permute.xlu0 %2973
        %2975 = vrot.lane.b32.xlu0 %v2263, 28
        %v2976 = vpop.permute.xlu0 %2975
        %2977 = vrot.lane.b32.xlu0 %v2266, 28
        %v2978 = vpop.permute.xlu0 %2977
        %2979 = vrot.lane.b32.xlu0 %v2268, 28
        %v2980 = vpop.permute.xlu0 %2979
        %2981 = vrot.lane.b32.xlu0 %v2271, 28
        %v2982 = vpop.permute.xlu0 %2981
        %2983 = vrot.lane.b32.xlu0 %v2273, 28
        %v2984 = vpop.permute.xlu0 %2983
        %2985 = vrot.lane.b32.xlu0 %v2276, 28
        %v2986 = vpop.permute.xlu0 %2985
        %2987 = vrot.lane.b32.xlu0 %v2278, 28
        %v2988 = vpop.permute.xlu0 %2987
        %2989 = vrot.lane.b32.xlu0 %v2281, 28
        %v2990 = vpop.permute.xlu0 %2989
        %2991 = vrot.lane.b32.xlu0 %v2283, 28
        %v2992 = vpop.permute.xlu0 %2991
        %2993 = vrot.lane.b32.xlu0 %v2286, 28
        %v2994 = vpop.permute.xlu0 %2993
        %2995 = vrot.lane.b32.xlu0 %v2288, 28
        %v2996 = vpop.permute.xlu0 %2995
        %2997 = vrot.lane.b32.xlu0 %v2291, 28
        %v2998 = vpop.permute.xlu0 %2997
        %2999 = vrot.lane.b32.xlu0 %v2293, 28
        %v3000 = vpop.permute.xlu0 %2999
        %3001 = vrot.lane.b32.xlu0 %v2296, 28
        %v3002 = vpop.permute.xlu0 %3001
        %3003 = vrot.lane.b32.xlu0 %v2298, 28
        %v3004 = vpop.permute.xlu0 %3003
        %3005 = vrot.lane.b32.xlu0 %v2301, 28
        %v3006 = vpop.permute.xlu0 %3005
        %3007 = vrot.lane.b32.xlu0 %v2303, 28
        %v3008 = vpop.permute.xlu0 %3007
        %3009 = vrot.lane.b32.xlu0 %v2306, 28
        %v3010 = vpop.permute.xlu0 %3009
        %3011 = vrot.lane.b32.xlu0 %v2308, 28
        %v3012 = vpop.permute.xlu0 %3011
        %3013 = vrot.lane.b32.xlu0 %v2311, 28
        %v3014 = vpop.permute.xlu0 %3013
        %3015 = vrot.lane.b32.xlu0 %v2313, 28
        %v3016 = vpop.permute.xlu0 %3015
        %3017 = vrot.lane.b32.xlu0 %v2316, 28
        %v3018 = vpop.permute.xlu0 %3017
        %3019 = vrot.lane.b32.xlu0 %v2318, 28
        %v3020 = vpop.permute.xlu0 %3019
        %3021 = vrot.lane.b32.xlu0 %v2321, 28
        %v3022 = vpop.permute.xlu0 %3021
        %3023 = vrot.lane.b32.xlu0 %v2323, 28
        %v3024 = vpop.permute.xlu0 %3023
        %3025 = vrot.lane.b32.xlu0 %v2403, 28
        %v3026 = vpop.permute.xlu0 %3025
        %3027 = vrot.lane.b32.xlu0 %v2405, 28
        %v3028 = vpop.permute.xlu0 %3027
        %3059 = vrot.lane.b32.xlu0 %v2326, 32
        %v3060 = vpop.permute.xlu0 %3059
        %3061 = vrot.lane.b32.xlu0 %v2328, 32
        %v3062 = vpop.permute.xlu0 %3061
        %3063 = vrot.lane.b32.xlu0 %v2336, 32
        %v3064 = vpop.permute.xlu0 %3063
        %3065 = vrot.lane.b32.xlu0 %v2338, 32
        %v3066 = vpop.permute.xlu0 %3065
        %3067 = vrot.lane.b32.xlu0 %v2341, 32
        %v3068 = vpop.permute.xlu0 %3067
        %3069 = vrot.lane.b32.xlu0 %v2343, 32
        %v3070 = vpop.permute.xlu0 %3069
        %3071 = vrot.lane.b32.xlu0 %v2346, 32
        %v3072 = vpop.permute.xlu0 %3071
        %3073 = vrot.lane.b32.xlu0 %v2348, 32
        %v3074 = vpop.permute.xlu0 %3073
        %3075 = vrot.lane.b32.xlu0 %v2351, 32
        %v3076 = vpop.permute.xlu0 %3075
        %3077 = vrot.lane.b32.xlu0 %v2353, 32
        %v3078 = vpop.permute.xlu0 %3077
        %3079 = vrot.lane.b32.xlu0 %v2356, 32
        %v3080 = vpop.permute.xlu0 %3079
        %3081 = vrot.lane.b32.xlu0 %v2358, 32
        %v3082 = vpop.permute.xlu0 %3081
        %3083 = vrot.lane.b32.xlu0 %v2361, 32
        %v3084 = vpop.permute.xlu0 %3083
        %3085 = vrot.lane.b32.xlu0 %v2363, 32
        %v3086 = vpop.permute.xlu0 %3085
        %3087 = vrot.lane.b32.xlu0 %v2366, 32
        %v3088 = vpop.permute.xlu0 %3087
        %3089 = vrot.lane.b32.xlu0 %v2368, 32
        %v3090 = vpop.permute.xlu0 %3089
        %3091 = vrot.lane.b32.xlu0 %v2371, 32
        %v3092 = vpop.permute.xlu0 %3091
        %3093 = vrot.lane.b32.xlu0 %v2373, 32
        %v3094 = vpop.permute.xlu0 %3093
        %3095 = vrot.lane.b32.xlu0 %v2376, 32
        %v3096 = vpop.permute.xlu0 %3095
        %3097 = vrot.lane.b32.xlu0 %v2378, 32
        %v3098 = vpop.permute.xlu0 %3097
        %3099 = vrot.lane.b32.xlu0 %v2381, 32
        %v3100 = vpop.permute.xlu0 %3099
        %3101 = vrot.lane.b32.xlu0 %v2383, 32
        %v3102 = vpop.permute.xlu0 %3101
        %3103 = vrot.lane.b32.xlu0 %v2386, 32
        %v3104 = vpop.permute.xlu0 %3103
        %3105 = vrot.lane.b32.xlu0 %v2388, 32
        %v3106 = vpop.permute.xlu0 %3105
        %3107 = vrot.lane.b32.xlu0 %v2391, 32
        %v3108 = vpop.permute.xlu0 %3107
        %3109 = vrot.lane.b32.xlu0 %v2393, 32
        %v3110 = vpop.permute.xlu0 %3109
        %3111 = vrot.lane.b32.xlu0 %v2396, 32
        %v3112 = vpop.permute.xlu0 %3111
        %3113 = vrot.lane.b32.xlu0 %v2398, 32
        %v3114 = vpop.permute.xlu0 %3113
        %3115 = vrot.lane.b32.xlu0 %v2408, 32
        %v3116 = vpop.permute.xlu0 %3115
        %3117 = vrot.lane.b32.xlu0 %v2410, 32
        %v3118 = vpop.permute.xlu0 %3117
        %v3149 = vsel %vm1423, %v2188, %v2412
        %v3150 = vsel %vm1423, %v2065, %v2414
        %v3151 = vsel %vm1423, %v2187, %v2416
        %v3152 = vsel %vm1423, %v2062, %v2418
        %v3153 = vsel %vm1423, %v2189, %v2420
        %v3154 = vsel %vm1423, %v2068, %v2422
        %v3155 = vsel %vm1423, %v2190, %v2424
        %v3156 = vsel %vm1423, %v2071, %v2426
        %v3157 = vsel %vm1423, %v2191, %v2428
        %v3158 = vsel %vm1423, %v2074, %v2430
        %v3159 = vsel %vm1423, %v2192, %v2432
        %v3160 = vsel %vm1423, %v2077, %v2434
        %v3161 = vsel %vm1423, %v2193, %v2436
        %v3162 = vsel %vm1423, %v2080, %v2438
        %v3163 = vsel %vm1423, %v2194, %v2440
        %v3164 = vsel %vm1423, %v2083, %v2442
        %v3165 = vsel %vm1423, %v2195, %v2444
        %v3166 = vsel %vm1423, %v2086, %v2446
        %v3167 = vsel %vm1423, %v2196, %v2448
        %v3168 = vsel %vm1423, %v2089, %v2450
        %v3169 = vsel %vm1423, %v2197, %v2452
        %v3170 = vsel %vm1423, %v2092, %v2454
        %v3171 = vsel %vm1423, %v2198, %v2456
        %v3172 = vsel %vm1423, %v2095, %v2458
        %v3173 = vsel %vm1423, %v2199, %v2460
        %v3174 = vsel %vm1423, %v2098, %v2462
        %v3175 = vsel %vm1423, %v2200, %v2464
        %v3176 = vsel %vm1423, %v2101, %v2466
        %v3177 = vsel %vm1423, %v2201, %v2468
        %v3178 = vsel %vm1423, %v2104, %v2470
        %v3179 = vsel %vm1454, %v3149, %v2502
        %v3180 = vsel %vm1454, %v3150, %v2504
        %v3181 = vsel %vm1454, %v3151, %v2506
        %v3182 = vsel %vm1454, %v3152, %v2508
        %v3183 = vsel %vm1454, %v3153, %v2510
        %v3184 = vsel %vm1454, %v3154, %v2512
        %v3185 = vsel %vm1454, %v3155, %v2514
        %v3186 = vsel %vm1454, %v3156, %v2516
        %v3187 = vsel %vm1454, %v3157, %v2518
        %v3188 = vsel %vm1454, %v3158, %v2520
        %v3189 = vsel %vm1454, %v3159, %v2522
        %v3190 = vsel %vm1454, %v3160, %v2524
        %v3191 = vsel %vm1454, %v3161, %v2526
        %v3192 = vsel %vm1454, %v3162, %v2528
        %v3193 = vsel %vm1454, %v3163, %v2530
        %v3194 = vsel %vm1454, %v3164, %v2532
        %v3195 = vsel %vm1454, %v3165, %v2534
        %v3196 = vsel %vm1454, %v3166, %v2536
        %v3197 = vsel %vm1454, %v3167, %v2538
        %v3198 = vsel %vm1454, %v3168, %v2540
        %v3199 = vsel %vm1454, %v3169, %v2542
        %v3200 = vsel %vm1454, %v3170, %v2544
        %v3201 = vsel %vm1454, %v3171, %v2546
        %v3202 = vsel %vm1454, %v3172, %v2548
        %v3203 = vsel %vm1454, %v3173, %v2550
        %v3204 = vsel %vm1454, %v3174, %v2552
        %v3205 = vsel %vm1454, %v3175, %v2554
        %v3206 = vsel %vm1454, %v3176, %v2556
        %v3207 = vsel %vm1454, %v3177, %v2558
        %v3208 = vsel %vm1454, %v3178, %v2560
        %v3209 = vsel %vm1485, %v3179, %v2592
        %v3210 = vsel %vm1485, %v3180, %v2594
        %v3211 = vsel %vm1485, %v3181, %v2596
        %v3212 = vsel %vm1485, %v3182, %v2598
        %v3213 = vsel %vm1485, %v3179, %v2600
        %v3214 = vsel %vm1485, %v3180, %v2602
        %v3215 = vsel %vm1485, %v3183, %v2604
        %v3216 = vsel %vm1485, %v3184, %v2606
        %v3217 = vsel %vm1485, %v3185, %v2608
        %v3218 = vsel %vm1485, %v3186, %v2610
        %v3219 = vsel %vm1485, %v3187, %v2612
        %v3220 = vsel %vm1485, %v3188, %v2614
        %v3221 = vsel %vm1485, %v3189, %v2616
        %v3222 = vsel %vm1485, %v3190, %v2618
        %v3223 = vsel %vm1485, %v3191, %v2620
        %v3224 = vsel %vm1485, %v3192, %v2622
        %v3225 = vsel %vm1485, %v3193, %v2624
        %v3226 = vsel %vm1485, %v3194, %v2626
        %v3227 = vsel %vm1485, %v3195, %v2628
        %v3228 = vsel %vm1485, %v3196, %v2630
        %v3229 = vsel %vm1485, %v3197, %v2632
        %v3230 = vsel %vm1485, %v3198, %v2634
        %v3231 = vsel %vm1485, %v3199, %v2636
        %v3232 = vsel %vm1485, %v3200, %v2638
        %v3233 = vsel %vm1485, %v3201, %v2640
        %v3234 = vsel %vm1485, %v3202, %v2642
        %v3235 = vsel %vm1485, %v3203, %v2644
        %v3236 = vsel %vm1485, %v3204, %v2646
        %v3237 = vsel %vm1485, %v3205, %v2648
        %v3238 = vsel %vm1485, %v3206, %v2650
        %v3239 = vsel %vm1485, %v3207, %v2652
        %v3240 = vsel %vm1485, %v3208, %v2654
        %v3241 = vsel %vm1518, %v3209, %v2688
        %v3242 = vsel %vm1518, %v3210, %v2690
        %v3243 = vsel %vm1518, %v3211, %v2692
        %v3244 = vsel %vm1518, %v3212, %v2694
        %v3245 = vsel %vm1518, %v3213, %v2696
        %v3246 = vsel %vm1518, %v3214, %v2698
        %v3247 = vsel %vm1518, %v3215, %v2700
        %v3248 = vsel %vm1518, %v3216, %v2702
        %v3249 = vsel %vm1518, %v3217, %v2704
        %v3250 = vsel %vm1518, %v3218, %v2706
        %v3251 = vsel %vm1518, %v3219, %v2708
        %v3252 = vsel %vm1518, %v3220, %v2710
        %v3253 = vsel %vm1518, %v3221, %v2712
        %v3254 = vsel %vm1518, %v3222, %v2714
        %v3255 = vsel %vm1518, %v3223, %v2716
        %v3256 = vsel %vm1518, %v3224, %v2718
        %v3257 = vsel %vm1518, %v3225, %v2720
        %v3258 = vsel %vm1518, %v3226, %v2722
        %v3259 = vsel %vm1518, %v3227, %v2724
        %v3260 = vsel %vm1518, %v3228, %v2726
        %v3261 = vsel %vm1518, %v3229, %v2728
        %v3262 = vsel %vm1518, %v3230, %v2730
        %v3263 = vsel %vm1518, %v3231, %v2732
        %v3264 = vsel %vm1518, %v3232, %v2734
        %v3265 = vsel %vm1518, %v3233, %v2736
        %v3266 = vsel %vm1518, %v3234, %v2738
        %v3267 = vsel %vm1518, %v3235, %v2740
        %v3268 = vsel %vm1518, %v3236, %v2742
        %v3269 = vsel %vm1518, %v3237, %v2744
        %v3270 = vsel %vm1518, %v3238, %v2746
        %v3271 = vsel %vm1518, %v3239, %v2748
        %v3272 = vsel %vm1518, %v3240, %v2750
        %v3273 = vsel %vm1551, %v3241, %v2784
        %v3274 = vsel %vm1551, %v3242, %v2786
        %v3275 = vsel %vm1551, %v3243, %v2788
        %v3276 = vsel %vm1551, %v3244, %v2790
        %v3277 = vsel %vm1551, %v3245, %v2792
        %v3278 = vsel %vm1551, %v3246, %v2794
        %v3279 = vsel %vm1551, %v3247, %v2796
        %v3280 = vsel %vm1551, %v3248, %v2798
        %v3281 = vsel %vm1551, %v3249, %v2800
        %v3282 = vsel %vm1551, %v3250, %v2802
        %v3283 = vsel %vm1551, %v3251, %v2804
        %v3284 = vsel %vm1551, %v3252, %v2806
        %v3285 = vsel %vm1551, %v3253, %v2808
        %v3286 = vsel %vm1551, %v3254, %v2810
        %v3287 = vsel %vm1551, %v3255, %v2812
        %v3288 = vsel %vm1551, %v3256, %v2814
        %v3289 = vsel %vm1551, %v3257, %v2816
        %v3290 = vsel %vm1551, %v3258, %v2818
        %v3291 = vsel %vm1551, %v3259, %v2820
        %v3292 = vsel %vm1551, %v3260, %v2822
        %v3293 = vsel %vm1551, %v3261, %v2824
        %v3294 = vsel %vm1551, %v3262, %v2826
        %v3295 = vsel %vm1551, %v3263, %v2828
        %v3296 = vsel %vm1551, %v3264, %v2830
        %v3297 = vsel %vm1551, %v3265, %v2832
        %v3298 = vsel %vm1551, %v3266, %v2834
        %v3299 = vsel %vm1551, %v3267, %v2836
        %v3300 = vsel %vm1551, %v3268, %v2838
        %v3301 = vsel %vm1551, %v3269, %v2840
        %v3302 = vsel %vm1551, %v3270, %v2842
        %v3303 = vsel %vm1551, %v3271, %v2844
        %v3304 = vsel %vm1551, %v3272, %v2846
        %v3305 = vsel %vm1584, %v3273, %v2880
        %v3306 = vsel %vm1584, %v3274, %v2882
        %v3307 = vsel %vm1584, %v3275, %v2884
        %v3308 = vsel %vm1584, %v3276, %v2886
        %v3309 = vsel %vm1584, %v3277, %v2888
        %v3310 = vsel %vm1584, %v3278, %v2890
        %v3311 = vsel %vm1584, %v3279, %v2892
        %v3312 = vsel %vm1584, %v3280, %v2894
        %v3313 = vsel %vm1584, %v3281, %v2896
        %v3314 = vsel %vm1584, %v3282, %v2898
        %v3315 = vsel %vm1584, %v3283, %v2900
        %v3316 = vsel %vm1584, %v3284, %v2902
        %v3317 = vsel %vm1584, %v3285, %v2904
        %v3318 = vsel %vm1584, %v3286, %v2906
        %v3319 = vsel %vm1584, %v3287, %v2908
        %v3320 = vsel %vm1584, %v3288, %v2910
        %v3321 = vsel %vm1584, %v3289, %v2912
        %v3322 = vsel %vm1584, %v3290, %v2914
        %v3323 = vsel %vm1584, %v3291, %v2916
        %v3324 = vsel %vm1584, %v3292, %v2918
        %v3325 = vsel %vm1584, %v3293, %v2920
        %v3326 = vsel %vm1584, %v3294, %v2922
        %v3327 = vsel %vm1584, %v3295, %v2924
        %v3328 = vsel %vm1584, %v3296, %v2926
        %v3329 = vsel %vm1584, %v3297, %v2928
        %v3330 = vsel %vm1584, %v3298, %v2930
        %v3331 = vsel %vm1584, %v3299, %v2932
        %v3332 = vsel %vm1584, %v3300, %v2934
        %v3333 = vsel %vm1584, %v3301, %v2936
        %v3334 = vsel %vm1584, %v3302, %v2938
        %v3335 = vsel %vm1584, %v3303, %v2932
        %v3336 = vsel %vm1584, %v3304, %v2934
        %v3337 = vsel %vm1617, %v3305, %v2970
        %v3338 = vsel %vm1617, %v3306, %v2972
        %v3339 = vsel %vm1617, %v3307, %v2974
        %v3340 = vsel %vm1617, %v3308, %v2976
        %v3341 = vsel %vm1617, %v3309, %v2978
        %v3342 = vsel %vm1617, %v3310, %v2980
        %v3343 = vsel %vm1617, %v3311, %v2982
        %v3344 = vsel %vm1617, %v3312, %v2984
        %v3345 = vsel %vm1617, %v3313, %v2986
        %v3346 = vsel %vm1617, %v3314, %v2988
        %v3347 = vsel %vm1617, %v3315, %v2990
        %v3348 = vsel %vm1617, %v3316, %v2992
        %v3349 = vsel %vm1617, %v3317, %v2994
        %v3350 = vsel %vm1617, %v3318, %v2996
        %v3351 = vsel %vm1617, %v3319, %v2998
        %v3352 = vsel %vm1617, %v3320, %v3000
        %v3353 = vsel %vm1617, %v3321, %v3002
        %v3354 = vsel %vm1617, %v3322, %v3004
        %v3355 = vsel %vm1617, %v3323, %v3006
        %v3356 = vsel %vm1617, %v3324, %v3008
        %v3357 = vsel %vm1617, %v3325, %v3010
        %v3358 = vsel %vm1617, %v3326, %v3012
        %v3359 = vsel %vm1617, %v3327, %v3014
        %v3360 = vsel %vm1617, %v3328, %v3016
        %v3361 = vsel %vm1617, %v3329, %v3018
        %v3362 = vsel %vm1617, %v3330, %v3020
        %v3363 = vsel %vm1617, %v3331, %v3022
        %v3364 = vsel %vm1617, %v3332, %v3024
        %v3365 = vsel %vm1617, %v3333, %v3026
        %v3366 = vsel %vm1617, %v3334, %v3028
        %v3367 = vsel %vm1617, %v3335, %v3022
        %v3368 = vsel %vm1617, %v3336, %v3024
        %v3369 = vsel %vm1650, %v3337, %v3060
        %v3370 = vsel %vm1650, %v3338, %v3062
        %v3371 = vsel %vm1650, %v3339, %v3064
        %v3372 = vsel %vm1650, %v3340, %v3066
        %v3373 = vsel %vm1650, %v3341, %v3068
        %v3374 = vsel %vm1650, %v3342, %v3070
        %v3375 = vsel %vm1650, %v3343, %v3072
        %v3376 = vsel %vm1650, %v3344, %v3074
        %v3377 = vsel %vm1650, %v3345, %v3076
        %v3378 = vsel %vm1650, %v3346, %v3078
        %v3379 = vsel %vm1650, %v3347, %v3080
        %v3380 = vsel %vm1650, %v3348, %v3082
        %v3381 = vsel %vm1650, %v3349, %v3084
        %v3382 = vsel %vm1650, %v3350, %v3086
        %v3383 = vsel %vm1650, %v3351, %v3088
        %v3384 = vsel %vm1650, %v3352, %v3090
        %v3385 = vsel %vm1650, %v3353, %v3092
        %v3386 = vsel %vm1650, %v3354, %v3094
        %v3387 = vsel %vm1650, %v3355, %v3096
        %v3388 = vsel %vm1650, %v3356, %v3098
        %v3389 = vsel %vm1650, %v3357, %v3100
        %v3390 = vsel %vm1650, %v3358, %v3102
        %v3391 = vsel %vm1650, %v3359, %v3104
        %v3392 = vsel %vm1650, %v3360, %v3106
        %v3393 = vsel %vm1650, %v3361, %v3108
        %v3394 = vsel %vm1650, %v3362, %v3110
        %v3395 = vsel %vm1650, %v3363, %v3112
        %v3396 = vsel %vm1650, %v3364, %v3114
        %v3397 = vsel %vm1650, %v3365, %v3116
        %v3398 = vsel %vm1650, %v3366, %v3118
        %v3399 = vsel %vm1650, %v3367, %v3112
        %v3400 = vsel %vm1650, %v3368, %v3114
        %v3402 = vperm.slane %v234, 0
        %v3405 = vsel %vm1686, %v3369, 0
        %v3408 = vsel %vm1686, %v3370, 0
        %v3411 = vsel %vm1686, %v3371, 0
        %v3414 = vsel %vm1686, %v3372, 0
        %v3417 = vsel %vm1686, %v3373, 0
        %v3420 = vsel %vm1686, %v3374, 0
        %v3423 = vsel %vm1686, %v3375, 0
        %v3426 = vsel %vm1686, %v3376, 0
        %v3429 = vsel %vm1686, %v3377, 0
        %v3432 = vsel %vm1686, %v3378, 0
        %v3435 = vsel %vm1686, %v3379, 0
        %v3438 = vsel %vm1686, %v3380, 0
        %v3441 = vsel %vm1686, %v3381, 0
        %v3444 = vsel %vm1686, %v3382, 0
        %v3447 = vsel %vm1686, %v3383, 0
        %v3450 = vsel %vm1686, %v3384, 0
        %v3453 = vsel %vm1686, %v3385, 0
        %v3456 = vsel %vm1686, %v3386, 0
        %v3459 = vsel %vm1686, %v3387, 0
        %v3462 = vsel %vm1686, %v3388, 0
        %v3465 = vsel %vm1686, %v3389, 0
        %v3468 = vsel %vm1686, %v3390, 0
        %v3471 = vsel %vm1686, %v3391, 0
        %v3474 = vsel %vm1686, %v3392, 0
        %v3477 = vsel %vm1686, %v3393, 0
        %v3480 = vsel %vm1686, %v3394, 0
        %v3483 = vsel %vm1686, %v3395, 0
        %v3486 = vsel %vm1686, %v3396, 0
        %v3489 = vsel %vm1686, %v3397, 0
        %v3492 = vsel %vm1686, %v3398, 0
        %v3495 = vsel %vm1686, %v3399, 0
        %v3498 = vsel %vm1686, %v3400, 0
        %v3501 = vsel %vm1783, %v233, 0
        %3503 = vmatpush.msra.mxu0 0.0
        %3504 = vmatpush.msra.mxu0 0.0
        %3505 = vmatpush.msra.mxu0 0.0
        %3506 = vmatpush.msra.mxu0 0.0
        %3507 = vmatpush.msra.mxu0 0.0
        %3508 = vmatpush.msra.mxu0 0.0
        %3509 = vmatpush.msra.mxu0 0.0
        %3510 = vmatpush.msra.mxu0 0.0
        %3511 = vmatpush.msra.mxu0 0.0
        %3512 = vmatpush.msra.mxu0 0.0
        %3513 = vmatpush.msra.mxu0 0.0
        %3514 = vmatpush.msra.mxu0 %v3501
        %3515 = vmatpush.msra.mxu0 %v232
        %3516 = vmatpush.msra.mxu0 %v231
        %3517 = vmatpush.msra.mxu0 %v230
        %3518 = vmatpush.msra.mxu0 %v229
        %3519 = vmatmul.f32.gmra.mxu0 %v3405
        %v3520 = vpop.f32.mrf.mxu0
        %v3521 = vadd.f32 %v3402, %v3520
        %3522 = vmatmul.f32.gmra.mxu0 %v3408
        %v3523 = vpop.f32.mrf.mxu0
        %v3524 = vadd.f32 %v3402, %v3523
        %3525 = vmatmul.f32.gmra.mxu0 %v3411
        %v3526 = vpop.f32.mrf.mxu0
        %v3527 = vadd.f32 %v3402, %v3526
        %3528 = vmatmul.f32.gmra.mxu0 %v3414
        %v3529 = vpop.f32.mrf.mxu0
        %v3530 = vadd.f32 %v3402, %v3529
        %3531 = vmatmul.f32.gmra.mxu0 %v3417
        %v3532 = vpop.f32.mrf.mxu0
        %v3533 = vadd.f32 %v3402, %v3532
        %3534 = vmatmul.f32.gmra.mxu0 %v3420
        %v3535 = vpop.f32.mrf.mxu0
        %v3536 = vadd.f32 %v3402, %v3535
        %3537 = vmatmul.f32.gmra.mxu0 %v3423
        %v3538 = vpop.f32.mrf.mxu0
        %v3539 = vadd.f32 %v3402, %v3538
        %3540 = vmatmul.f32.gmra.mxu0 %v3426
        %v3541 = vpop.f32.mrf.mxu0
        %v3542 = vadd.f32 %v3402, %v3541
        %3543 = vmatmul.f32.gmra.mxu0 %v3429
        %v3544 = vpop.f32.mrf.mxu0
        %v3545 = vadd.f32 %v3402, %v3544
        %3546 = vmatmul.f32.gmra.mxu0 %v3432
        %v3547 = vpop.f32.mrf.mxu0
        %v3548 = vadd.f32 %v3402, %v3547
        %3549 = vmatmul.f32.gmra.mxu0 %v3435
        %v3550 = vpop.f32.mrf.mxu0
        %v3551 = vadd.f32 %v3402, %v3550
        %3552 = vmatmul.f32.gmra.mxu0 %v3438
        %v3553 = vpop.f32.mrf.mxu0
        %v3554 = vadd.f32 %v3402, %v3553
        %3555 = vmatmul.f32.gmra.mxu0 %v3441
        %v3556 = vpop.f32.mrf.mxu0
        %v3557 = vadd.f32 %v3402, %v3556
        %3558 = vmatmul.f32.gmra.mxu0 %v3444
        %v3559 = vpop.f32.mrf.mxu0
        %v3560 = vadd.f32 %v3402, %v3559
        %3561 = vmatmul.f32.gmra.mxu0 %v3447
        %v3562 = vpop.f32.mrf.mxu0
        %v3563 = vadd.f32 %v3402, %v3562
        %3564 = vmatmul.f32.gmra.mxu0 %v3450
        %v3565 = vpop.f32.mrf.mxu0
        %v3566 = vadd.f32 %v3402, %v3565
        %3567 = vmatmul.f32.gmra.mxu0 %v3453
        %v3568 = vpop.f32.mrf.mxu0
        %v3569 = vadd.f32 %v3402, %v3568
        %3570 = vmatmul.f32.gmra.mxu0 %v3456
        %v3571 = vpop.f32.mrf.mxu0
        %v3572 = vadd.f32 %v3402, %v3571
        %3573 = vmatmul.f32.gmra.mxu0 %v3459
        %v3574 = vpop.f32.mrf.mxu0
        %v3575 = vadd.f32 %v3402, %v3574
        %3576 = vmatmul.f32.gmra.mxu0 %v3462
        %v3577 = vpop.f32.mrf.mxu0
        %v3578 = vadd.f32 %v3402, %v3577
        %3579 = vmatmul.f32.gmra.mxu0 %v3465
        %v3580 = vpop.f32.mrf.mxu0
        %v3581 = vadd.f32 %v3402, %v3580
        %3582 = vmatmul.f32.gmra.mxu0 %v3468
        %v3583 = vpop.f32.mrf.mxu0
        %v3584 = vadd.f32 %v3402, %v3583
        %3585 = vmatmul.f32.gmra.mxu0 %v3471
        %v3586 = vpop.f32.mrf.mxu0
        %v3587 = vadd.f32 %v3402, %v3586
        %3588 = vmatmul.f32.gmra.mxu0 %v3474
        %v3589 = vpop.f32.mrf.mxu0
        %v3590 = vadd.f32 %v3402, %v3589
        %3591 = vmatmul.f32.gmra.mxu0 %v3477
        %v3592 = vpop.f32.mrf.mxu0
        %v3593 = vadd.f32 %v3402, %v3592
        %3594 = vmatmul.f32.gmra.mxu0 %v3480
        %v3595 = vpop.f32.mrf.mxu0
        %v3596 = vadd.f32 %v3402, %v3595
        %3597 = vmatmul.f32.gmra.mxu0 %v3483
        %v3598 = vpop.f32.mrf.mxu0
        %v3599 = vadd.f32 %v3402, %v3598
        %3600 = vmatmul.f32.gmra.mxu0 %v3486
        %v3601 = vpop.f32.mrf.mxu0
        %v3602 = vadd.f32 %v3402, %v3601
        %3603 = vmatmul.f32.gmra.mxu0 %v3489
        %v3604 = vpop.f32.mrf.mxu0
        %v3605 = vadd.f32 %v3402, %v3604
        %3606 = vmatmul.f32.gmra.mxu0 %v3492
        %v3607 = vpop.f32.mrf.mxu0
        %v3608 = vadd.f32 %v3402, %v3607
        %3609 = vmatmul.f32.gmra.mxu0 %v3495
        %v3610 = vpop.f32.mrf.mxu0
        %v3611 = vadd.f32 %v3402, %v3610
        %3612 = vmatmul.f32.gmra.mxu0 %v3498
        %v3613 = vpop.f32.mrf.mxu0
        %v3614 = vadd.f32 %v3402, %v3613
        %3615 = vdwg.mxu0
        %vm3616 = vcmp.ge.f32.partialorder %v3521, 0.0
        %vm3617 = vcmp.ge.f32.partialorder %v3524, 0.0
        %vm3618 = vcmp.ge.f32.partialorder %v3527, 0.0
        %vm3619 = vcmp.ge.f32.partialorder %v3530, 0.0
        %vm3620 = vcmp.ge.f32.partialorder %v3533, 0.0
        %vm3621 = vcmp.ge.f32.partialorder %v3536, 0.0
        %vm3622 = vcmp.ge.f32.partialorder %v3539, 0.0
        %vm3623 = vcmp.ge.f32.partialorder %v3542, 0.0
        %vm3624 = vcmp.ge.f32.partialorder %v3545, 0.0
        %vm3625 = vcmp.ge.f32.partialorder %v3548, 0.0
        %vm3626 = vcmp.ge.f32.partialorder %v3551, 0.0
        %vm3627 = vcmp.ge.f32.partialorder %v3554, 0.0
        %vm3628 = vcmp.ge.f32.partialorder %v3557, 0.0
        %vm3629 = vcmp.ge.f32.partialorder %v3560, 0.0
        %vm3630 = vcmp.ge.f32.partialorder %v3563, 0.0
        %vm3631 = vcmp.ge.f32.partialorder %v3566, 0.0
        %vm3632 = vcmp.ge.f32.partialorder %v3569, 0.0
        %vm3633 = vcmp.ge.f32.partialorder %v3572, 0.0
        %vm3634 = vcmp.ge.f32.partialorder %v3575, 0.0
        %vm3635 = vcmp.ge.f32.partialorder %v3578, 0.0
        %vm3636 = vcmp.ge.f32.partialorder %v3581, 0.0
        %vm3637 = vcmp.ge.f32.partialorder %v3584, 0.0
        %vm3638 = vcmp.ge.f32.partialorder %v3587, 0.0
        %vm3639 = vcmp.ge.f32.partialorder %v3590, 0.0
        %vm3640 = vcmp.ge.f32.partialorder %v3593, 0.0
        %vm3641 = vcmp.ge.f32.partialorder %v3596, 0.0
        %vm3642 = vcmp.ge.f32.partialorder %v3599, 0.0
        %vm3643 = vcmp.ge.f32.partialorder %v3602, 0.0
        %vm3644 = vcmp.ge.f32.partialorder %v3605, 0.0
        %vm3645 = vcmp.ge.f32.partialorder %v3608, 0.0
        %vm3646 = vcmp.ge.f32.partialorder %v3611, 0.0
        %vm3647 = vcmp.ge.f32.partialorder %v3614, 0.0
        %v3648 = vmul.f32 %v3521, 0.2
        %v3649 = vmul.f32 %v3524, 0.2
        %v3650 = vmul.f32 %v3527, 0.2
        %v3651 = vmul.f32 %v3530, 0.2
        %v3652 = vmul.f32 %v3533, 0.2
        %v3653 = vmul.f32 %v3536, 0.2
        %v3654 = vmul.f32 %v3539, 0.2
        %v3655 = vmul.f32 %v3542, 0.2
        %v3656 = vmul.f32 %v3545, 0.2
        %v3657 = vmul.f32 %v3548, 0.2
        %v3658 = vmul.f32 %v3551, 0.2
        %v3659 = vmul.f32 %v3554, 0.2
        %v3660 = vmul.f32 %v3557, 0.2
        %v3661 = vmul.f32 %v3560, 0.2
        %v3662 = vmul.f32 %v3563, 0.2
        %v3663 = vmul.f32 %v3566, 0.2
        %v3664 = vmul.f32 %v3569, 0.2
        %v3665 = vmul.f32 %v3572, 0.2
        %v3666 = vmul.f32 %v3575, 0.2
        %v3667 = vmul.f32 %v3578, 0.2
        %v3668 = vmul.f32 %v3581, 0.2
        %v3669 = vmul.f32 %v3584, 0.2
        %v3670 = vmul.f32 %v3587, 0.2
        %v3671 = vmul.f32 %v3590, 0.2
        %v3672 = vmul.f32 %v3593, 0.2
        %v3673 = vmul.f32 %v3596, 0.2
        %v3674 = vmul.f32 %v3599, 0.2
        %v3675 = vmul.f32 %v3602, 0.2
        %v3676 = vmul.f32 %v3605, 0.2
        %v3677 = vmul.f32 %v3608, 0.2
        %v3678 = vmul.f32 %v3611, 0.2
        %v3679 = vmul.f32 %v3614, 0.2
        %v3680 = vsel %vm3616, %v3521, %v3648
        %v3681 = vsel %vm3617, %v3524, %v3649
        %v3682 = vsel %vm3618, %v3527, %v3650
        %v3683 = vsel %vm3619, %v3530, %v3651
        %v3684 = vsel %vm3620, %v3533, %v3652
        %v3685 = vsel %vm3621, %v3536, %v3653
        %v3686 = vsel %vm3622, %v3539, %v3654
        %v3687 = vsel %vm3623, %v3542, %v3655
        %v3688 = vsel %vm3624, %v3545, %v3656
        %v3689 = vsel %vm3625, %v3548, %v3657
        %v3690 = vsel %vm3626, %v3551, %v3658
        %v3691 = vsel %vm3627, %v3554, %v3659
        %v3692 = vsel %vm3628, %v3557, %v3660
        %v3693 = vsel %vm3629, %v3560, %v3661
        %v3694 = vsel %vm3630, %v3563, %v3662
        %v3695 = vsel %vm3631, %v3566, %v3663
        %v3696 = vsel %vm3632, %v3569, %v3664
        %v3697 = vsel %vm3633, %v3572, %v3665
        %v3698 = vsel %vm3634, %v3575, %v3666
        %v3699 = vsel %vm3635, %v3578, %v3667
        %v3700 = vsel %vm3636, %v3581, %v3668
        %v3701 = vsel %vm3637, %v3584, %v3669
        %v3702 = vsel %vm3638, %v3587, %v3670
        %v3703 = vsel %vm3639, %v3590, %v3671
        %v3704 = vsel %vm3640, %v3593, %v3672
        %v3705 = vsel %vm3641, %v3596, %v3673
        %v3706 = vsel %vm3642, %v3599, %v3674
        %v3707 = vsel %vm3643, %v3602, %v3675
        %v3708 = vsel %vm3644, %v3605, %v3676
        %v3709 = vsel %vm3645, %v3608, %v3677
        %v3710 = vsel %vm3646, %v3611, %v3678
        %v3711 = vsel %vm3647, %v3614, %v3679
        %v3712 = vlaneseq
        %v3713 = vshrl.u32 %v3712, 7
        %v3714 = vlaneseq
        %v3715 = vand.u32 %v3714, 127
        %vm3716 = vcmp.eq.s32.totalorder %v3713, %v3715
        %v3717 = vsel %vm3716, 1, 0
        %v3718 = vcvt.s32.f32 %v3717
        %v3720 = vsel %vm1423, %v3718, 0
        %v3723 = vsel %vm1423, %v3680, 0
        %v3726 = vsel %vm1423, %v3681, 0
        %v3729 = vsel %vm1423, %v3682, 0
        %v3732 = vsel %vm1423, %v3683, 0
        %v3735 = vsel %vm1423, %v3684, 0
        %v3738 = vsel %vm1423, %v3685, 0
        %v3741 = vsel %vm1423, %v3686, 0
        %v3744 = vsel %vm1423, %v3687, 0
        %v3747 = vsel %vm1423, %v3688, 0
        %v3750 = vsel %vm1423, %v3689, 0
        %v3753 = vsel %vm1423, %v3690, 0
        %v3756 = vsel %vm1423, %v3691, 0
        %v3759 = vsel %vm1423, %v3692, 0
        %v3762 = vsel %vm1423, %v3693, 0
        %v3765 = vsel %vm1423, %v3694, 0
        %v3768 = vsel %vm1423, %v3695, 0
        %v3771 = vsel %vm1423, %v3696, 0
        %v3774 = vsel %vm1423, %v3697, 0
        %v3777 = vsel %vm1423, %v3698, 0
        %v3780 = vsel %vm1423, %v3699, 0
        %v3783 = vsel %vm1423, %v3700, 0
        %v3786 = vsel %vm1423, %v3701, 0
        %v3789 = vsel %vm1423, %v3702, 0
        %v3792 = vsel %vm1423, %v3703, 0
        %v3795 = vsel %vm1423, %v3704, 0
        %v3798 = vsel %vm1423, %v3705, 0
        %v3801 = vsel %vm1423, %v3706, 0
        %v3804 = vsel %vm1423, %v3707, 0
        %v3807 = vsel %vm1423, %v3708, 0
        %v3810 = vsel %vm1423, %v3709, 0
        %v3813 = vsel %vm1423, %v3710, 0
        %v3816 = vsel %vm1423, %v3711, 0
        %3818 = vmatpush.xpose.msra.mxu0 %v3768
        %3819 = vmatpush.xpose.msra.mxu0 %v3765
        %3820 = vmatpush.xpose.msra.mxu0 %v3762
        %3821 = vmatpush.xpose.msra.mxu0 %v3759
        %3822 = vmatpush.xpose.msra.mxu0 %v3756
        %3823 = vmatpush.xpose.msra.mxu0 %v3753
        %3824 = vmatpush.xpose.msra.mxu0 %v3750
        %3825 = vmatpush.xpose.msra.mxu0 %v3747
        %3826 = vmatpush.xpose.msra.mxu0 %v3744
        %3827 = vmatpush.xpose.msra.mxu0 %v3741
        %3828 = vmatpush.xpose.msra.mxu0 %v3738
        %3829 = vmatpush.xpose.msra.mxu0 %v3735
        %3830 = vmatpush.xpose.msra.mxu0 %v3732
        %3831 = vmatpush.xpose.msra.mxu0 %v3729
        %3832 = vmatpush.xpose.msra.mxu0 %v3726
        %3833 = vmatpush.xpose.msra.mxu0 %v3723
        %3834 = vmatmul.f32.gmra.mxu0 %v3720
        %v3835 = vpop.f32.mrf.mxu0
        %v3836 = vadd.f32 0.0, %v3835
        %3837 = vdwg.mxu0
        %3838 = vmatpush.xpose.msra.mxu0 %v3816
        %3839 = vmatpush.xpose.msra.mxu0 %v3813
        %3840 = vmatpush.xpose.msra.mxu0 %v3810
        %3841 = vmatpush.xpose.msra.mxu0 %v3807
        %3842 = vmatpush.xpose.msra.mxu0 %v3804
        %3843 = vmatpush.xpose.msra.mxu0 %v3801
        %3844 = vmatpush.xpose.msra.mxu0 %v3798
        %3845 = vmatpush.xpose.msra.mxu0 %v3795
        %3846 = vmatpush.xpose.msra.mxu0 %v3792
        %3847 = vmatpush.xpose.msra.mxu0 %v3789
        %3848 = vmatpush.xpose.msra.mxu0 %v3786
        %3849 = vmatpush.xpose.msra.mxu0 %v3783
        %3850 = vmatpush.xpose.msra.mxu0 %v3780
        %3851 = vmatpush.xpose.msra.mxu0 %v3777
        %3852 = vmatpush.xpose.msra.mxu0 %v3774
        %3853 = vmatpush.xpose.msra.mxu0 %v3771
        %3854 = vmatmul.f32.gmra.mxu0 %v3720
        %v3855 = vpop.f32.mrf.mxu0
        %v3856 = vadd.f32 0.0, %v3855
        %3857 = vdwg.mxu0
        %v3860 = vrot.slane %v3856, 4
        %v3861 = vsel %vm1783, %v3836, %v3860
        %3863 = vst [vmem:[%s217] sm:$0xff] %v3861
        %s3864 = sand.u32 %s137, 1
        %s3865 = scalar_lea.sflag [#allocation3], %s3864
        %s3866 = sand.u32 %s137, 1
        %s3867 = smul.addr %s3866, 8
        %s3868 = scalar_lea.vmem [#allocation2], %s3867
        // Predicated region
        $region41: #{tpu_custom_call.1} parent=39 // pred_check
          %p3869 = pneg %p147
        $region42: #{tpu_custom_call.1} parent=39 // pred_check_branch
          %3871 = sbr.rel (%p3869) target = $region44
        $region43: #{tpu_custom_call.1} parent=39 // pred_region
          %3873 = vsyncadd %s3865, 0
          %s3874 = smul.addr %s19, 2
          %s3875 = smul.addr %s3874, 4
          %s3876 = scalar_lea.hbm %s5, %s3875
          %s3878 = sshll.u32 %s3868, 4
          %s3879 = int_to_ptr.vmem [resolvable:$true] %s3878
          %s3880 = sshll.u32 %s3876, 4
          %s3881 = int_to_ptr.hbm [resolvable:$true] %s3880
          %3883 = dma.vmem_to_hbm [thread:$0]  %s3879, 128, %s3881, %s3865
        $region44: #{tpu_custom_call.1} parent=39 // pred_fallthru
          _
      $region40: #{tpu_custom_call.1} parent=5 // pred_fallthru
        _
      %p3884 = scmp.le.s32.totalorder 2, %s14
      // Predicated region
      $region45: #{tpu_custom_call.1} parent=5 // pred_check
        %p3885 = pneg %p3884
      $region46: #{tpu_custom_call.1} parent=5 // pred_check_branch
        %3887 = sbr.rel (%p3885) target = $region48
      $region47: #{tpu_custom_call.1} parent=5 // pred_region
        %s3888 = ssub.s32 %s14, 2
        // Predicated region
        $region49: #{tpu_custom_call.1} parent=47 // pred_check
          %p3889 = pneg %p153
        $region50: #{tpu_custom_call.1} parent=47 // pred_check_branch
          %3891 = sbr.rel (%p3889) target = $region52
        $region51: #{tpu_custom_call.1} parent=47 // pred_region
          %s3892 = sand.u32 %s138, 1
          %s3893 = scalar_lea.sflag [#allocation3], %s3892
          %s3894 = sand.u32 %s138, 1
          %s3895 = smul.addr %s3894, 8
          %s3896 = scalar_lea.vmem [#allocation2], %s3895
          %3898 = dma.done %s3893, 128
        $region52: #{tpu_custom_call.1} parent=47 // pred_fallthru
          _
      $region48: #{tpu_custom_call.1} parent=5 // pred_fallthru
        _
    $region6: #{tpu_custom_call.1} parent=1 // loop_footer
      %s18 = sadd.s32 1, %s14
    $region7: #{tpu_custom_call.1} parent=1 // loop_footer_branch
      %13 = sbr.rel target = $region3
    $region8: #{tpu_custom_call.1} parent=1 // loop_exit
      _
    %3899 = vsyncpa [#allocation3], 1
    %s3900 = scalar_lea.sflag [#allocation3], 1
    %3901 = vsyncpa %s3900, 1

</llo_original>
